<compile_context>
chip_gen: v5e
topology: v5e:2x2
jax: 0.10.0
libtpu: 0.0.40
codegen_flags: <defaults>
</compile_context>

<pallas_src>
import functools

import jax
import jax.numpy as jnp
from jax import lax
from jax.experimental import pallas as pl
from jax.experimental.pallas import tpu as pltpu

# ----------------------------- model dims -----------------------------------
H = 32               # synthetic "bert hidden_size" (bert-base would be 768)
FF = 4 * H           # feed-forward inner dim
D1, D2 = 512, 256    # feature_extractor dims (fixed in the PyTorch module)
NUM_CLASSES = 10
C_PAD = 128          # lane-dense padded class dimension for the output store
VOCAB = 64
MAX_POS = 16
_SCALE = 1.0 / (H ** 0.5)
_NEG = -1e9

# prepared (kernel-facing) parameter order: QKV fused, head lane-padded.
PARAM_NAMES = (
    'ln0g', 'ln0b',
    'wqkv', 'bqkv', 'wo', 'bo',
    'ln1g', 'ln1b',
    'w1', 'b1', 'w2', 'b2',
    'ln2g', 'ln2b',
    'wp', 'bp',
    'hw1', 'hb1', 'hw2', 'hb2', 'hw3', 'hb3',
)
# 2-D matmul weights stored in bf16 (MXU operands); accumulation stays f32.
_MATMUL_WEIGHTS = frozenset({'wqkv', 'wo', 'w1', 'w2', 'wp', 'hw1', 'hw2', 'hw3'})


# --------------------------- shared math (kernel + reference) ----------------
def _mm(a, b):
    """MXU matmul, bf16 operands, f32 accumulation (v6e/v7x native path)."""
    return jnp.dot(a.astype(jnp.bfloat16), b.astype(jnp.bfloat16),
                   preferred_element_type=jnp.float32)


def _mm_nt(a, b):
    """a @ b.T (contract last axes), bf16 operands, f32 accumulation."""
    return jnp.einsum('qh,kh->qk',
                      a.astype(jnp.bfloat16), b.astype(jnp.bfloat16),
                      preferred_element_type=jnp.float32)


def _layernorm(x, g, b, eps=1e-12):
    mu = jnp.mean(x, axis=-1, keepdims=True)
    var = jnp.mean((x - mu) ** 2, axis=-1, keepdims=True)
    return (x - mu) * lax.rsqrt(var + eps) * g + b


def _encoder_head_math(x, attn_bias, w, pool_rows, pool_stride):
    """x: [M,H] f32 embeddings; attn_bias: [M,M] additive mask.

    `w` maps names to Refs (kernel) or arrays (reference); every weight is
    loaded lazily at its use site via `w[name][...]` (works for both).
    Returns [pool_rows, C_PAD] log-probabilities.
    """
    g = lambda name: w[name][...]
    x = _layernorm(x, g('ln0g'), g('ln0b'))

    # fused QKV: one [M,H] x [H,3H] MXU pass, then static lane slices
    qkv = _mm(x, g('wqkv')) + g('bqkv')                               # [M, 3H]
    q, k, v = qkv[:, :H], qkv[:, H:2 * H], qkv[:, 2 * H:]

    scores = _mm_nt(q, k) * _SCALE + attn_bias                        # [M, M]
    m = jnp.max(scores, axis=-1, keepdims=True)
    p = jnp.exp(scores - m)
    attn = p / jnp.sum(p, axis=-1, keepdims=True)
    ctx = _mm(attn, v)                                                # [M, H]
    h = _layernorm(x + _mm(ctx, g('wo')) + g('bo'), g('ln1g'), g('ln1b'))

    # feed forward
    # TODO(synk): HF BERT uses the exact erf GELU; tanh approximation used here.
    ff = jax.nn.gelu(_mm(h, g('w1')) + g('b1'), approximate=True)
    h2 = _layernorm(h + _mm(ff, g('w2')) + g('b2'), g('ln2g'), g('ln2b'))

    # pooler: select CLS row of every example (rows 0, stride, 2*stride, ...)
    # via an exact f32 one-hot selection matmul, then tanh(W_p @ cls + b_p)
    n_tok = h2.shape[0]
    col = lax.broadcasted_iota(jnp.int32, (pool_rows, n_tok), 1)
    row = lax.broadcasted_iota(jnp.int32, (pool_rows, n_tok), 0)
    sel = (col == row * pool_stride).astype(jnp.float32)
    cls = jnp.dot(sel, h2, preferred_element_type=jnp.float32)        # [B, H]
    pooled = jnp.tanh(_mm(cls, g('wp')) + g('bp'))

    # feature_extractor + classifier + LogSoftmax; Dropout(0.2) = identity (eval)
    f1 = jnp.maximum(_mm(pooled, g('hw1')) + g('hb1'), 0.0)
    f2 = jnp.maximum(_mm(f1, g('hw2')) + g('hb2'), 0.0)
    logits = _mm(f2, g('hw3')) + g('hb3')          # [B, C_PAD]; padded cols = -1e9
    z = logits - jnp.max(logits, axis=-1, keepdims=True)
    return z - jnp.log(jnp.sum(jnp.exp(z), axis=-1, keepdims=True))   # log-probs


# ------------------------------ fused Pallas kernel --------------------------
def fused_kernel(batch, seq_len, ids_ref, tok_emb_ref, pos_ref, bias_ref, *rest):
    """Whole batch in one invocation: embeddings -> encoder -> pooler -> head."""
    out_ref = rest[-1]                              # [B, C_PAD] lane-dense store
    w = dict(zip(PARAM_NAMES, rest[:-1]))           # keep Refs -> use-site (lazy) loads
    n_tok = batch * seq_len

    # vectorized in-kernel embedding "gather": one broadcast compare + exact
    # f32 one-hot matmul ([M,VOCAB] x [VOCAB,H]) + positional embeddings.
    ids = ids_ref[...]                                                # [M, 1] int32
    col = lax.broadcasted_iota(jnp.int32, (n_tok, VOCAB), 1)
    onehot = (col == ids).astype(jnp.float32)                         # [M, VOCAB]
    x = jnp.dot(onehot, tok_emb_ref[...],
                preferred_element_type=jnp.float32) + pos_ref[...]    # [M, H]

    out_ref[...] = _encoder_head_math(x, bias_ref[...], w, batch, seq_len)


# ------------------------------ wrapper --------------------------------------
@jax.jit
def intent_classifier_forward(input_ids, attention_mask, prepared):
    B, S = input_ids.shape
    M = B * S
    ids2 = input_ids.reshape(M, 1).astype(jnp.int32)
    pos_flat = jnp.tile(prepared['pos_emb'][:S], (B, 1))              # [M, H]

    # block-diagonal additive attention bias: a query attends only to keys of
    # its own example and only where attention_mask == 1.
    same_ex = (jnp.arange(M)[:, None] // S) == (jnp.arange(M)[None, :] // S)
    key_ok = attention_mask.reshape(M) > 0
    bias = jnp.where(same_ex & key_ok[None, :], 0.0, _NEG).astype(jnp.float32)

    weights = [prepared[k] for k in PARAM_NAMES]
    vmem = pl.BlockSpec(memory_space=pltpu.MemorySpace.VMEM)

    # Single grid step for the whole batch: amortizes MXU weight pushes over B
    # rows, removes per-example grid overhead, and the [B,128] output store is
    # fully lane-dense (sliced back to NUM_CLASSES below).
    # TODO(synk): for large B on v7x, split into grid=(2,) with B/2 rows per
    #   step (dimension_semantics=("parallel",)) to occupy both TensorCores.
    out = pl.pallas_call(
        functools.partial(fused_kernel, B, S),
        out_shape=jax.ShapeDtypeStruct((B, C_PAD), jnp.float32),
        in_specs=[vmem] * (4 + len(weights)),
        out_specs=vmem,
    )(ids2, prepared['tok_emb'], pos_flat, bias, *weights)
    return out[:, :NUM_CLASSES]


# pure-JAX per-example reference (identical math via the shared helpers)
def reference_forward(input_ids, attention_mask, prepared):
    B, S = input_ids.shape
    w = {k: prepared[k] for k in PARAM_NAMES}
    x_emb = prepared['tok_emb'][input_ids] + prepared['pos_emb'][:S][None]   # [B,S,H]
    key_bias = jnp.where(attention_mask > 0, 0.0, _NEG).astype(jnp.float32)  # [B,S]

    def per_example(x, kb):
        full_bias = jnp.broadcast_to(kb[None, :], (S, S))
        return _encoder_head_math(x, full_bias, w, 1, S)[0]                  # [C_PAD]

    out = jax.vmap(per_example)(x_emb, key_bias)
    return out[:, :NUM_CLASSES]


# ------------------------------ parameters -----------------------------------
def init_params(key):
    ks = jax.random.split(key, 12)
    w = lambda k, shp, s=0.05: jax.random.normal(k, shp, jnp.float32) * s
    ones = lambda shp: jnp.ones(shp, jnp.float32)
    zeros = lambda shp: jnp.zeros(shp, jnp.float32)
    return {
        'tok_emb': w(ks[0], (VOCAB, H)),
        'pos_emb': w(ks[1], (MAX_POS, H)),
        'ln0g': ones((1, H)), 'ln0b': zeros((1, H)),
        'wq': w(ks[2], (H, H)), 'bq': zeros((1, H)),
        'wk': w(ks[3], (H, H)), 'bk': zeros((1, H)),
        'wv': w(ks[4], (H, H)), 'bv': zeros((1, H)),
        'wo': w(ks[5], (H, H)), 'bo': zeros((1, H)),
        'ln1g': ones((1, H)), 'ln1b': zeros((1, H)),
        'w1': w(ks[6], (H, FF)), 'b1': zeros((1, FF)),
        'w2': w(ks[7], (FF, H)), 'b2': zeros((1, H)),
        'ln2g': ones((1, H)), 'ln2b': zeros((1, H)),
        'wp': w(ks[8], (H, H)), 'bp': zeros((1, H)),
        # head: Linear(H,512)->ReLU->Drop->Linear(512,256)->ReLU->Drop->Linear(256,C)
        'hw1': w(ks[9], (H, D1)), 'hb1': zeros((1, D1)),
        'hw2': w(ks[10], (D1, D2)), 'hb2': zeros((1, D2)),
        'hw3': w(ks[11], (D2, NUM_CLASSES)), 'hb3': zeros((1, NUM_CLASSES)),
    }


def prepare_params(p):
    """One-time (outside jit) packing: fuse QKV, lane-pad the classifier head,
    and pre-cast MXU weights to bf16 so the per-call wrapper does no weight work."""
    out = {
        'tok_emb': p['tok_emb'],
        'pos_emb': p['pos_emb'],
        'ln0g': p['ln0g'], 'ln0b': p['ln0b'],
        'wqkv': jnp.concatenate([p['wq'], p['wk'], p['wv']], axis=1),   # [H, 3H]
        'bqkv': jnp.concatenate([p['bq'], p['bk'], p['bv']], axis=1),   # [1, 3H]
        'wo': p['wo'], 'bo': p['bo'],
        'ln1g': p['ln1g'], 'ln1b': p['ln1b'],
        'w1': p['w1'], 'b1': p['b1'], 'w2': p['w2'], 'b2': p['b2'],
        'ln2g': p['ln2g'], 'ln2b': p['ln2b'],
        'wp': p['wp'], 'bp': p['bp'],
        'hw1': p['hw1'], 'hb1': p['hb1'], 'hw2': p['hw2'], 'hb2': p['hb2'],
        # lane-dense padded head: zero weight cols, -1e9 bias -> padded classes
        # contribute exactly 0 to the softmax normalizer.
        'hw3': jnp.pad(p['hw3'], ((0, 0), (0, C_PAD - NUM_CLASSES))),
        'hb3': jnp.pad(p['hb3'], ((0, 0), (0, C_PAD - NUM_CLASSES)),
                       constant_values=_NEG),
    }
    for k in _MATMUL_WEIGHTS:
        out[k] = out[k].astype(jnp.bfloat16)
    return out


if __name__ == "__main__":
    key = jax.random.PRNGKey(0)
    kp, kid = jax.random.split(key)
    params = init_params(kp)
    prepared = prepare_params(params)        # one-time weight packing / bf16 cast

    B, S = 2, 8
    input_ids = jax.random.randint(kid, (B, S), 0, VOCAB, dtype=jnp.int32)
    attention_mask = jnp.array(
        [[1, 1, 1, 1, 1, 1, 1, 1],
         [1, 1, 1, 1, 1, 0, 0, 0]], dtype=jnp.int32)

    logprobs = jax.block_until_ready(
        intent_classifier_forward(input_ids, attention_mask, prepared))

    ref = reference_forward(input_ids, attention_mask, prepared)
    assert logprobs.shape == (B, NUM_CLASSES)
    max_err = float(jnp.max(jnp.abs(logprobs - ref)))
    assert jnp.allclose(logprobs, ref, atol=1e-3, rtol=1e-3), (
        f"max abs err {max_err}")
    # log-softmax rows must exp-sum to 1
    assert jnp.allclose(jnp.sum(jnp.exp(logprobs), axis=1), 1.0, atol=1e-4)

    print("KERNEL_OK")
</pallas_src>

<mosaic_0001>
module attributes {stable_mosaic.version = 11 : i64} {
  func.func @fused_kernel(%arg0: memref<16x1xi32, #tpu.memory_space<vmem>>, %arg1: memref<64x32xf32, #tpu.memory_space<vmem>>, %arg2: memref<16x32xf32, #tpu.memory_space<vmem>>, %arg3: memref<16x16xf32, #tpu.memory_space<vmem>>, %arg4: memref<1x32xf32, #tpu.memory_space<vmem>>, %arg5: memref<1x32xf32, #tpu.memory_space<vmem>>, %arg6: memref<32x96xbf16, #tpu.memory_space<vmem>>, %arg7: memref<1x96xf32, #tpu.memory_space<vmem>>, %arg8: memref<32x32xbf16, #tpu.memory_space<vmem>>, %arg9: memref<1x32xf32, #tpu.memory_space<vmem>>, %arg10: memref<1x32xf32, #tpu.memory_space<vmem>>, %arg11: memref<1x32xf32, #tpu.memory_space<vmem>>, %arg12: memref<32x128xbf16, #tpu.memory_space<vmem>>, %arg13: memref<1x128xf32, #tpu.memory_space<vmem>>, %arg14: memref<128x32xbf16, #tpu.memory_space<vmem>>, %arg15: memref<1x32xf32, #tpu.memory_space<vmem>>, %arg16: memref<1x32xf32, #tpu.memory_space<vmem>>, %arg17: memref<1x32xf32, #tpu.memory_space<vmem>>, %arg18: memref<32x32xbf16, #tpu.memory_space<vmem>>, %arg19: memref<1x32xf32, #tpu.memory_space<vmem>>, %arg20: memref<32x512xbf16, #tpu.memory_space<vmem>>, %arg21: memref<1x512xf32, #tpu.memory_space<vmem>>, %arg22: memref<512x256xbf16, #tpu.memory_space<vmem>>, %arg23: memref<1x256xf32, #tpu.memory_space<vmem>>, %arg24: memref<256x128xbf16, #tpu.memory_space<vmem>>, %arg25: memref<1x128xf32, #tpu.memory_space<vmem>>, %arg26: memref<2x128xf32, #tpu.memory_space<vmem>>) attributes {dimension_semantics = [], scalar_prefetch = 0 : i64, scratch_operands = 0 : i64, tpu.core_type = #tpu.core_type<tc>} {
    %c0 = arith.constant 0 : index
    %c0_0 = arith.constant 0 : index
    %0 = vector.load %arg0[%c0, %c0_0] : memref<16x1xi32, #tpu.memory_space<vmem>>, vector<16x1xi32>
    %1 = tpu.iota {dimensions = array<i32: 1>} : vector<16x64xi32>
    %2 = vector.broadcast %0 : vector<16x1xi32> to vector<16x64xi32>
    %3 = arith.cmpi eq, %1, %2 : vector<16x64xi32>
    %4 = arith.extui %3 : vector<16x64xi1> to vector<16x64xi32>
    %5 = arith.sitofp %4 : vector<16x64xi32> to vector<16x64xf32>
    %c0_1 = arith.constant 0 : index
    %c0_2 = arith.constant 0 : index
    %6 = vector.load %arg1[%c0_1, %c0_2] : memref<64x32xf32, #tpu.memory_space<vmem>>, vector<64x32xf32>
    %cst = arith.constant dense<0.000000e+00> : vector<16x32xf32>
    %7 = tpu.matmul %5, %6, %cst {dimension_numbers = #tpu.dot_dimension_numbers<[1], [0], [0], [1], [0, 0, 1, 1], [], []>} : vector<16x64xf32>, vector<64x32xf32>, vector<16x32xf32> -> vector<16x32xf32>
    %c0_3 = arith.constant 0 : index
    %c0_4 = arith.constant 0 : index
    %8 = vector.load %arg2[%c0_3, %c0_4] : memref<16x32xf32, #tpu.memory_space<vmem>>, vector<16x32xf32>
    %9 = arith.addf %7, %8 : vector<16x32xf32>
    %c0_5 = arith.constant 0 : index
    %c0_6 = arith.constant 0 : index
    %10 = vector.load %arg3[%c0_5, %c0_6] : memref<16x16xf32, #tpu.memory_space<vmem>>, vector<16x16xf32>
    %c0_7 = arith.constant 0 : index
    %c0_8 = arith.constant 0 : index
    %11 = vector.load %arg4[%c0_7, %c0_8] : memref<1x32xf32, #tpu.memory_space<vmem>>, vector<1x32xf32>
    %c0_9 = arith.constant 0 : index
    %c0_10 = arith.constant 0 : index
    %12 = vector.load %arg5[%c0_9, %c0_10] : memref<1x32xf32, #tpu.memory_space<vmem>>, vector<1x32xf32>
    %cst_11 = arith.constant dense<0.000000e+00> : vector<16xf32>
    %13 = vector.multi_reduction <add>, %9, %cst_11 [1] : vector<16x32xf32> to vector<16xf32>
    %14 = vector.shape_cast %13 : vector<16xf32> to vector<16x1xf32>
    %cst_12 = arith.constant 3.200000e+01 : f32
    %15 = vector.broadcast %cst_12 : f32 to vector<16x1xf32>
    %16 = arith.divf %14, %15 : vector<16x1xf32>
    %17 = vector.broadcast %16 : vector<16x1xf32> to vector<16x32xf32>
    %18 = arith.subf %9, %17 : vector<16x32xf32>
    %19 = arith.mulf %18, %18 : vector<16x32xf32>
    %cst_13 = arith.constant dense<0.000000e+00> : vector<16xf32>
    %20 = vector.multi_reduction <add>, %19, %cst_13 [1] : vector<16x32xf32> to vector<16xf32>
    %21 = vector.shape_cast %20 : vector<16xf32> to vector<16x1xf32>
    %cst_14 = arith.constant 3.200000e+01 : f32
    %22 = vector.broadcast %cst_14 : f32 to vector<16x1xf32>
    %23 = arith.divf %21, %22 : vector<16x1xf32>
    %24 = vector.broadcast %16 : vector<16x1xf32> to vector<16x32xf32>
    %25 = arith.subf %9, %24 : vector<16x32xf32>
    %cst_15 = arith.constant 9.99999996E-13 : f32
    %26 = vector.broadcast %cst_15 : f32 to vector<16x1xf32>
    %27 = arith.addf %23, %26 : vector<16x1xf32>
    %28 = math.rsqrt %27 : vector<16x1xf32>
    %29 = vector.broadcast %28 : vector<16x1xf32> to vector<16x32xf32>
    %30 = arith.mulf %25, %29 : vector<16x32xf32>
    %31 = vector.broadcast %11 : vector<1x32xf32> to vector<16x32xf32>
    %32 = arith.mulf %30, %31 : vector<16x32xf32>
    %33 = vector.broadcast %12 : vector<1x32xf32> to vector<16x32xf32>
    %34 = arith.addf %32, %33 : vector<16x32xf32>
    %c0_16 = arith.constant 0 : index
    %c0_17 = arith.constant 0 : index
    %35 = vector.load %arg6[%c0_16, %c0_17] : memref<32x96xbf16, #tpu.memory_space<vmem>>, vector<32x96xbf16>
    %36 = arith.truncf %34 : vector<16x32xf32> to vector<16x32xbf16>
    %cst_18 = arith.constant dense<0.000000e+00> : vector<16x96xf32>
    %37 = tpu.matmul %36, %35, %cst_18 {dimension_numbers = #tpu.dot_dimension_numbers<[1], [0], [0], [1], [0, 0, 1, 1], [], []>} : vector<16x32xbf16>, vector<32x96xbf16>, vector<16x96xf32> -> vector<16x96xf32>
    %c0_19 = arith.constant 0 : index
    %c0_20 = arith.constant 0 : index
    %38 = vector.load %arg7[%c0_19, %c0_20] : memref<1x96xf32, #tpu.memory_space<vmem>>, vector<1x96xf32>
    %39 = vector.broadcast %38 : vector<1x96xf32> to vector<16x96xf32>
    %40 = arith.addf %37, %39 : vector<16x96xf32>
    %41 = vector.extract_strided_slice %40 {offsets = [0, 0], sizes = [16, 32], strides = [1, 1]} : vector<16x96xf32> to vector<16x32xf32>
    %42 = vector.extract_strided_slice %40 {offsets = [0, 32], sizes = [16, 32], strides = [1, 1]} : vector<16x96xf32> to vector<16x32xf32>
    %43 = vector.extract_strided_slice %40 {offsets = [0, 64], sizes = [16, 32], strides = [1, 1]} : vector<16x96xf32> to vector<16x32xf32>
    %44 = arith.truncf %41 : vector<16x32xf32> to vector<16x32xbf16>
    %45 = arith.truncf %42 : vector<16x32xf32> to vector<16x32xbf16>
    "tpu.trace_start"() <{level = 10 : i32, message = "qh,kh->qk"}> : () -> ()
    %cst_21 = arith.constant dense<0.000000e+00> : vector<16x16xf32>
    %46 = tpu.matmul %44, %45, %cst_21 {dimension_numbers = #tpu.dot_dimension_numbers<[1], [1], [0], [0], [0, 0, 1, 0], [], []>} : vector<16x32xbf16>, vector<16x32xbf16>, vector<16x16xf32> -> vector<16x16xf32>
    "tpu.trace_stop"() : () -> ()
    %cst_22 = arith.constant 0.176776692 : f32
    %47 = vector.broadcast %cst_22 : f32 to vector<16x16xf32>
    %48 = arith.mulf %46, %47 : vector<16x16xf32>
    %49 = arith.addf %48, %10 : vector<16x16xf32>
    %cst_23 = arith.constant dense<0xFF800000> : vector<16xf32>
    %50 = vector.multi_reduction <maximumf>, %49, %cst_23 [1] : vector<16x16xf32> to vector<16xf32>
    %51 = vector.shape_cast %50 : vector<16xf32> to vector<16x1xf32>
    %52 = vector.broadcast %51 : vector<16x1xf32> to vector<16x16xf32>
    %53 = arith.subf %49, %52 : vector<16x16xf32>
    %54 = math.exp %53 : vector<16x16xf32>
    %cst_24 = arith.constant dense<0.000000e+00> : vector<16xf32>
    %55 = vector.multi_reduction <add>, %54, %cst_24 [1] : vector<16x16xf32> to vector<16xf32>
    %56 = vector.shape_cast %55 : vector<16xf32> to vector<16x1xf32>
    %57 = vector.broadcast %56 : vector<16x1xf32> to vector<16x16xf32>
    %58 = arith.divf %54, %57 : vector<16x16xf32>
    %59 = arith.truncf %58 : vector<16x16xf32> to vector<16x16xbf16>
    %60 = arith.truncf %43 : vector<16x32xf32> to vector<16x32xbf16>
    %cst_25 = arith.constant dense<0.000000e+00> : vector<16x32xf32>
    %61 = tpu.matmul %59, %60, %cst_25 {dimension_numbers = #tpu.dot_dimension_numbers<[1], [0], [0], [1], [0, 0, 1, 1], [], []>} : vector<16x16xbf16>, vector<16x32xbf16>, vector<16x32xf32> -> vector<16x32xf32>
    %c0_26 = arith.constant 0 : index
    %c0_27 = arith.constant 0 : index
    %62 = vector.load %arg8[%c0_26, %c0_27] : memref<32x32xbf16, #tpu.memory_space<vmem>>, vector<32x32xbf16>
    %63 = arith.truncf %61 : vector<16x32xf32> to vector<16x32xbf16>
    %cst_28 = arith.constant dense<0.000000e+00> : vector<16x32xf32>
    %64 = tpu.matmul %63, %62, %cst_28 {dimension_numbers = #tpu.dot_dimension_numbers<[1], [0], [0], [1], [0, 0, 1, 1], [], []>} : vector<16x32xbf16>, vector<32x32xbf16>, vector<16x32xf32> -> vector<16x32xf32>
    %65 = arith.addf %34, %64 : vector<16x32xf32>
    %c0_29 = arith.constant 0 : index
    %c0_30 = arith.constant 0 : index
    %66 = vector.load %arg9[%c0_29, %c0_30] : memref<1x32xf32, #tpu.memory_space<vmem>>, vector<1x32xf32>
    %67 = vector.broadcast %66 : vector<1x32xf32> to vector<16x32xf32>
    %68 = arith.addf %65, %67 : vector<16x32xf32>
    %c0_31 = arith.constant 0 : index
    %c0_32 = arith.constant 0 : index
    %69 = vector.load %arg10[%c0_31, %c0_32] : memref<1x32xf32, #tpu.memory_space<vmem>>, vector<1x32xf32>
    %c0_33 = arith.constant 0 : index
    %c0_34 = arith.constant 0 : index
    %70 = vector.load %arg11[%c0_33, %c0_34] : memref<1x32xf32, #tpu.memory_space<vmem>>, vector<1x32xf32>
    %cst_35 = arith.constant dense<0.000000e+00> : vector<16xf32>
    %71 = vector.multi_reduction <add>, %68, %cst_35 [1] : vector<16x32xf32> to vector<16xf32>
    %72 = vector.shape_cast %71 : vector<16xf32> to vector<16x1xf32>
    %cst_36 = arith.constant 3.200000e+01 : f32
    %73 = vector.broadcast %cst_36 : f32 to vector<16x1xf32>
    %74 = arith.divf %72, %73 : vector<16x1xf32>
    %75 = vector.broadcast %74 : vector<16x1xf32> to vector<16x32xf32>
    %76 = arith.subf %68, %75 : vector<16x32xf32>
    %77 = arith.mulf %76, %76 : vector<16x32xf32>
    %cst_37 = arith.constant dense<0.000000e+00> : vector<16xf32>
    %78 = vector.multi_reduction <add>, %77, %cst_37 [1] : vector<16x32xf32> to vector<16xf32>
    %79 = vector.shape_cast %78 : vector<16xf32> to vector<16x1xf32>
    %cst_38 = arith.constant 3.200000e+01 : f32
    %80 = vector.broadcast %cst_38 : f32 to vector<16x1xf32>
    %81 = arith.divf %79, %80 : vector<16x1xf32>
    %82 = vector.broadcast %74 : vector<16x1xf32> to vector<16x32xf32>
    %83 = arith.subf %68, %82 : vector<16x32xf32>
    %cst_39 = arith.constant 9.99999996E-13 : f32
    %84 = vector.broadcast %cst_39 : f32 to vector<16x1xf32>
    %85 = arith.addf %81, %84 : vector<16x1xf32>
    %86 = math.rsqrt %85 : vector<16x1xf32>
    %87 = vector.broadcast %86 : vector<16x1xf32> to vector<16x32xf32>
    %88 = arith.mulf %83, %87 : vector<16x32xf32>
    %89 = vector.broadcast %69 : vector<1x32xf32> to vector<16x32xf32>
    %90 = arith.mulf %88, %89 : vector<16x32xf32>
    %91 = vector.broadcast %70 : vector<1x32xf32> to vector<16x32xf32>
    %92 = arith.addf %90, %91 : vector<16x32xf32>
    %c0_40 = arith.constant 0 : index
    %c0_41 = arith.constant 0 : index
    %93 = vector.load %arg12[%c0_40, %c0_41] : memref<32x128xbf16, #tpu.memory_space<vmem>>, vector<32x128xbf16>
    %94 = arith.truncf %92 : vector<16x32xf32> to vector<16x32xbf16>
    %cst_42 = arith.constant dense<0.000000e+00> : vector<16x128xf32>
    %95 = tpu.matmul %94, %93, %cst_42 {dimension_numbers = #tpu.dot_dimension_numbers<[1], [0], [0], [1], [0, 0, 1, 1], [], []>} : vector<16x32xbf16>, vector<32x128xbf16>, vector<16x128xf32> -> vector<16x128xf32>
    %c0_43 = arith.constant 0 : index
    %c0_44 = arith.constant 0 : index
    %96 = vector.load %arg13[%c0_43, %c0_44] : memref<1x128xf32, #tpu.memory_space<vmem>>, vector<1x128xf32>
    %97 = vector.broadcast %96 : vector<1x128xf32> to vector<16x128xf32>
    %98 = arith.addf %95, %97 : vector<16x128xf32>
    %99 = arith.mulf %98, %98 : vector<16x128xf32>
    %100 = arith.mulf %98, %99 : vector<16x128xf32>
    %cst_45 = arith.constant 4.471500e-02 : f32
    %101 = vector.broadcast %cst_45 : f32 to vector<16x128xf32>
    %102 = arith.mulf %101, %100 : vector<16x128xf32>
    %103 = arith.addf %98, %102 : vector<16x128xf32>
    %cst_46 = arith.constant 0.797884583 : f32
    %104 = vector.broadcast %cst_46 : f32 to vector<16x128xf32>
    %105 = arith.mulf %104, %103 : vector<16x128xf32>
    %106 = math.tanh %105 : vector<16x128xf32>
    %cst_47 = arith.constant 1.000000e+00 : f32
    %107 = vector.broadcast %cst_47 : f32 to vector<16x128xf32>
    %108 = arith.addf %107, %106 : vector<16x128xf32>
    %cst_48 = arith.constant 5.000000e-01 : f32
    %109 = vector.broadcast %cst_48 : f32 to vector<16x128xf32>
    %110 = arith.mulf %109, %108 : vector<16x128xf32>
    %111 = arith.mulf %98, %110 : vector<16x128xf32>
    %c0_49 = arith.constant 0 : index
    %c0_50 = arith.constant 0 : index
    %112 = vector.load %arg14[%c0_49, %c0_50] : memref<128x32xbf16, #tpu.memory_space<vmem>>, vector<128x32xbf16>
    %113 = arith.truncf %111 : vector<16x128xf32> to vector<16x128xbf16>
    %cst_51 = arith.constant dense<0.000000e+00> : vector<16x32xf32>
    %114 = tpu.matmul %113, %112, %cst_51 {dimension_numbers = #tpu.dot_dimension_numbers<[1], [0], [0], [1], [0, 0, 1, 1], [], []>} : vector<16x128xbf16>, vector<128x32xbf16>, vector<16x32xf32> -> vector<16x32xf32>
    %115 = arith.addf %92, %114 : vector<16x32xf32>
    %c0_52 = arith.constant 0 : index
    %c0_53 = arith.constant 0 : index
    %116 = vector.load %arg15[%c0_52, %c0_53] : memref<1x32xf32, #tpu.memory_space<vmem>>, vector<1x32xf32>
    %117 = vector.broadcast %116 : vector<1x32xf32> to vector<16x32xf32>
    %118 = arith.addf %115, %117 : vector<16x32xf32>
    %c0_54 = arith.constant 0 : index
    %c0_55 = arith.constant 0 : index
    %119 = vector.load %arg16[%c0_54, %c0_55] : memref<1x32xf32, #tpu.memory_space<vmem>>, vector<1x32xf32>
    %c0_56 = arith.constant 0 : index
    %c0_57 = arith.constant 0 : index
    %120 = vector.load %arg17[%c0_56, %c0_57] : memref<1x32xf32, #tpu.memory_space<vmem>>, vector<1x32xf32>
    %cst_58 = arith.constant dense<0.000000e+00> : vector<16xf32>
    %121 = vector.multi_reduction <add>, %118, %cst_58 [1] : vector<16x32xf32> to vector<16xf32>
    %122 = vector.shape_cast %121 : vector<16xf32> to vector<16x1xf32>
    %cst_59 = arith.constant 3.200000e+01 : f32
    %123 = vector.broadcast %cst_59 : f32 to vector<16x1xf32>
    %124 = arith.divf %122, %123 : vector<16x1xf32>
    %125 = vector.broadcast %124 : vector<16x1xf32> to vector<16x32xf32>
    %126 = arith.subf %118, %125 : vector<16x32xf32>
    %127 = arith.mulf %126, %126 : vector<16x32xf32>
    %cst_60 = arith.constant dense<0.000000e+00> : vector<16xf32>
    %128 = vector.multi_reduction <add>, %127, %cst_60 [1] : vector<16x32xf32> to vector<16xf32>
    %129 = vector.shape_cast %128 : vector<16xf32> to vector<16x1xf32>
    %cst_61 = arith.constant 3.200000e+01 : f32
    %130 = vector.broadcast %cst_61 : f32 to vector<16x1xf32>
    %131 = arith.divf %129, %130 : vector<16x1xf32>
    %132 = vector.broadcast %124 : vector<16x1xf32> to vector<16x32xf32>
    %133 = arith.subf %118, %132 : vector<16x32xf32>
    %cst_62 = arith.constant 9.99999996E-13 : f32
    %134 = vector.broadcast %cst_62 : f32 to vector<16x1xf32>
    %135 = arith.addf %131, %134 : vector<16x1xf32>
    %136 = math.rsqrt %135 : vector<16x1xf32>
    %137 = vector.broadcast %136 : vector<16x1xf32> to vector<16x32xf32>
    %138 = arith.mulf %133, %137 : vector<16x32xf32>
    %139 = vector.broadcast %119 : vector<1x32xf32> to vector<16x32xf32>
    %140 = arith.mulf %138, %139 : vector<16x32xf32>
    %141 = vector.broadcast %120 : vector<1x32xf32> to vector<16x32xf32>
    %142 = arith.addf %140, %141 : vector<16x32xf32>
    %143 = tpu.iota {dimensions = array<i32: 1>} : vector<2x16xi32>
    %144 = tpu.iota {dimensions = array<i32: 0>} : vector<2x16xi32>
    %c8_i32 = arith.constant 8 : i32
    %145 = vector.broadcast %c8_i32 : i32 to vector<2x16xi32>
    %146 = arith.muli %144, %145 : vector<2x16xi32>
    %147 = arith.cmpi eq, %143, %146 : vector<2x16xi32>
    %148 = arith.extui %147 : vector<2x16xi1> to vector<2x16xi32>
    %149 = arith.sitofp %148 : vector<2x16xi32> to vector<2x16xf32>
    %cst_63 = arith.constant dense<0.000000e+00> : vector<2x32xf32>
    %150 = tpu.matmul %149, %142, %cst_63 {dimension_numbers = #tpu.dot_dimension_numbers<[1], [0], [0], [1], [0, 0, 1, 1], [], []>} : vector<2x16xf32>, vector<16x32xf32>, vector<2x32xf32> -> vector<2x32xf32>
    %c0_64 = arith.constant 0 : index
    %c0_65 = arith.constant 0 : index
    %151 = vector.load %arg18[%c0_64, %c0_65] : memref<32x32xbf16, #tpu.memory_space<vmem>>, vector<32x32xbf16>
    %152 = arith.truncf %150 : vector<2x32xf32> to vector<2x32xbf16>
    %cst_66 = arith.constant dense<0.000000e+00> : vector<2x32xf32>
    %153 = tpu.matmul %152, %151, %cst_66 {dimension_numbers = #tpu.dot_dimension_numbers<[1], [0], [0], [1], [0, 0, 1, 1], [], []>} : vector<2x32xbf16>, vector<32x32xbf16>, vector<2x32xf32> -> vector<2x32xf32>
    %c0_67 = arith.constant 0 : index
    %c0_68 = arith.constant 0 : index
    %154 = vector.load %arg19[%c0_67, %c0_68] : memref<1x32xf32, #tpu.memory_space<vmem>>, vector<1x32xf32>
    %155 = vector.broadcast %154 : vector<1x32xf32> to vector<2x32xf32>
    %156 = arith.addf %153, %155 : vector<2x32xf32>
    %157 = math.tanh %156 : vector<2x32xf32>
    %c0_69 = arith.constant 0 : index
    %c0_70 = arith.constant 0 : index
    %158 = vector.load %arg20[%c0_69, %c0_70] : memref<32x512xbf16, #tpu.memory_space<vmem>>, vector<32x512xbf16>
    %159 = arith.truncf %157 : vector<2x32xf32> to vector<2x32xbf16>
    %cst_71 = arith.constant dense<0.000000e+00> : vector<2x512xf32>
    %160 = tpu.matmul %159, %158, %cst_71 {dimension_numbers = #tpu.dot_dimension_numbers<[1], [0], [0], [1], [0, 0, 1, 1], [], []>} : vector<2x32xbf16>, vector<32x512xbf16>, vector<2x512xf32> -> vector<2x512xf32>
    %c0_72 = arith.constant 0 : index
    %c0_73 = arith.constant 0 : index
    %161 = vector.load %arg21[%c0_72, %c0_73] : memref<1x512xf32, #tpu.memory_space<vmem>>, vector<1x512xf32>
    %162 = vector.broadcast %161 : vector<1x512xf32> to vector<2x512xf32>
    %163 = arith.addf %160, %162 : vector<2x512xf32>
    %cst_74 = arith.constant 0.000000e+00 : f32
    %164 = vector.broadcast %cst_74 : f32 to vector<2x512xf32>
    %165 = arith.maximumf %163, %164 : vector<2x512xf32>
    %c0_75 = arith.constant 0 : index
    %c0_76 = arith.constant 0 : index
    %166 = vector.load %arg22[%c0_75, %c0_76] : memref<512x256xbf16, #tpu.memory_space<vmem>>, vector<512x256xbf16>
    %167 = arith.truncf %165 : vector<2x512xf32> to vector<2x512xbf16>
    %cst_77 = arith.constant dense<0.000000e+00> : vector<2x256xf32>
    %168 = tpu.matmul %167, %166, %cst_77 {dimension_numbers = #tpu.dot_dimension_numbers<[1], [0], [0], [1], [0, 0, 1, 1], [], []>} : vector<2x512xbf16>, vector<512x256xbf16>, vector<2x256xf32> -> vector<2x256xf32>
    %c0_78 = arith.constant 0 : index
    %c0_79 = arith.constant 0 : index
    %169 = vector.load %arg23[%c0_78, %c0_79] : memref<1x256xf32, #tpu.memory_space<vmem>>, vector<1x256xf32>
    %170 = vector.broadcast %169 : vector<1x256xf32> to vector<2x256xf32>
    %171 = arith.addf %168, %170 : vector<2x256xf32>
    %cst_80 = arith.constant 0.000000e+00 : f32
    %172 = vector.broadcast %cst_80 : f32 to vector<2x256xf32>
    %173 = arith.maximumf %171, %172 : vector<2x256xf32>
    %c0_81 = arith.constant 0 : index
    %c0_82 = arith.constant 0 : index
    %174 = vector.load %arg24[%c0_81, %c0_82] : memref<256x128xbf16, #tpu.memory_space<vmem>>, vector<256x128xbf16>
    %175 = arith.truncf %173 : vector<2x256xf32> to vector<2x256xbf16>
    %cst_83 = arith.constant dense<0.000000e+00> : vector<2x128xf32>
    %176 = tpu.matmul %175, %174, %cst_83 {dimension_numbers = #tpu.dot_dimension_numbers<[1], [0], [0], [1], [0, 0, 1, 1], [], []>} : vector<2x256xbf16>, vector<256x128xbf16>, vector<2x128xf32> -> vector<2x128xf32>
    %c0_84 = arith.constant 0 : index
    %c0_85 = arith.constant 0 : index
    %177 = vector.load %arg25[%c0_84, %c0_85] : memref<1x128xf32, #tpu.memory_space<vmem>>, vector<1x128xf32>
    %178 = vector.broadcast %177 : vector<1x128xf32> to vector<2x128xf32>
    %179 = arith.addf %176, %178 : vector<2x128xf32>
    %cst_86 = arith.constant dense<0xFF800000> : vector<2xf32>
    %180 = vector.multi_reduction <maximumf>, %179, %cst_86 [1] : vector<2x128xf32> to vector<2xf32>
    %181 = vector.shape_cast %180 : vector<2xf32> to vector<2x1xf32>
    %182 = vector.broadcast %181 : vector<2x1xf32> to vector<2x128xf32>
    %183 = arith.subf %179, %182 : vector<2x128xf32>
    %184 = math.exp %183 : vector<2x128xf32>
    %cst_87 = arith.constant dense<0.000000e+00> : vector<2xf32>
    %185 = vector.multi_reduction <add>, %184, %cst_87 [1] : vector<2x128xf32> to vector<2xf32>
    %186 = vector.shape_cast %185 : vector<2xf32> to vector<2x1xf32>
    %187 = math.log %186 : vector<2x1xf32>
    %188 = vector.broadcast %187 : vector<2x1xf32> to vector<2x128xf32>
    %189 = arith.subf %183, %188 : vector<2x128xf32>
    %c0_88 = arith.constant 0 : index
    %c0_89 = arith.constant 0 : index
    %190 = vector.load %arg26[%c0_88, %c0_89] : memref<2x128xf32, #tpu.memory_space<vmem>>, vector<2x128xf32>
    tpu.vector_store %arg26[%c0_88, %c0_89], %189 {strides = array<i32>} : memref<2x128xf32, #tpu.memory_space<vmem>>, vector<2x128xf32>,
    return
  }
}

</mosaic_0001>

<llo_original>
// kernel: intent_classifier_forward.1
$region0: #{intent_classifier_forward.1}
  #allocation0 [shape = 'u32[]', space=smem, size = 0x4, offset = 0x4, fixed_abs, tag = 'smem constant byte address 0x4 - core index']
  #allocation1 [shape = 'u32[72,128]{1,0:T(1,128)}', space=vmem, size = 0x9000, scoped, tag = 'internal scratch']
  %s0 = inlined_call_operand.vmem [shape: s32[16,1], index: 0, kind: input, shape index: {}]
  %s1 = inlined_call_operand.vmem [shape: f32[64,32], index: 1, kind: input, shape index: {}]
  %s2 = inlined_call_operand.vmem [shape: f32[16,32], index: 2, kind: input, shape index: {}]
  %s3 = inlined_call_operand.vmem [shape: f32[16,16], index: 3, kind: input, shape index: {}]
  %s4 = inlined_call_operand.vmem [shape: f32[1,32], index: 4, kind: input, shape index: {}]
  %s5 = inlined_call_operand.vmem [shape: f32[1,32], index: 5, kind: input, shape index: {}]
  %s6 = inlined_call_operand.vmem [shape: bf16[32,96], index: 6, kind: input, shape index: {}]
  %s7 = inlined_call_operand.vmem [shape: f32[1,96], index: 7, kind: input, shape index: {}]
  %s8 = inlined_call_operand.vmem [shape: bf16[32,32], index: 8, kind: input, shape index: {}]
  %s9 = inlined_call_operand.vmem [shape: f32[1,32], index: 9, kind: input, shape index: {}]
  %s10 = inlined_call_operand.vmem [shape: f32[1,32], index: 10, kind: input, shape index: {}]
  %s11 = inlined_call_operand.vmem [shape: f32[1,32], index: 11, kind: input, shape index: {}]
  %s12 = inlined_call_operand.vmem [shape: bf16[32,128], index: 12, kind: input, shape index: {}]
  %s13 = inlined_call_operand.hbm [shape: f32[1,128], index: 13, kind: input, shape index: {}]
  %s14 = inlined_call_operand.vmem [shape: bf16[128,32], index: 14, kind: input, shape index: {}]
  %s15 = inlined_call_operand.hbm [shape: f32[1,32], index: 15, kind: input, shape index: {}]
  %s16 = inlined_call_operand.vmem [shape: f32[1,32], index: 16, kind: input, shape index: {}]
  %s17 = inlined_call_operand.vmem [shape: f32[1,32], index: 17, kind: input, shape index: {}]
  %s18 = inlined_call_operand.vmem [shape: bf16[32,32], index: 18, kind: input, shape index: {}]
  %s19 = inlined_call_operand.hbm [shape: f32[1,32], index: 19, kind: input, shape index: {}]
  %s20 = inlined_call_operand.hbm [shape: bf16[32,512], index: 20, kind: input, shape index: {}]
  %s21 = inlined_call_operand.vmem [shape: f32[1,512], index: 21, kind: input, shape index: {}]
  %s22 = inlined_call_operand.hbm [shape: bf16[512,256], index: 22, kind: input, shape index: {}]
  %s23 = inlined_call_operand.vmem [shape: f32[1,256], index: 23, kind: input, shape index: {}]
  %s24 = inlined_call_operand.vmem [shape: bf16[256,128], index: 24, kind: input, shape index: {}]
  %s25 = inlined_call_operand.vmem [shape: f32[1,128], index: 25, kind: input, shape index: {}]
  %s26 = inlined_call_operand.hbm [shape: f32[2,128], index: 26, kind: output, shape index: {}]
  %s27 = sld [smem:[#allocation0]]
  $region134: #{intent_classifier_forward.1} parent=0
    _
  %s29 = ssub.s32 1, %s27
  %s30 = scalar_select 0, %s29, %s27
  $region1: #{intent_classifier_forward.1} parent=0
    #allocation2 [shape = 'u8[512]{0}', space=vmem, size = 0x400, scoped, tag = 'input window, operand 13, single buffered']
    #allocation3 [shape = 's32[1]{0}', space=sflag, size = 0x4, scoped, tag = 'scoped memory for intent_classifier_forward.1']
    #allocation4 [shape = 's32[1]{0}', space=sflag, size = 0x4, scoped, tag = 'scoped memory for intent_classifier_forward.1']
    #allocation5 [shape = 'u8[512]{0}', space=vmem, size = 0x400, scoped, tag = 'input window, operand 15, single buffered']
    #allocation6 [shape = 's32[1]{0}', space=sflag, size = 0x4, scoped, tag = 'scoped memory for intent_classifier_forward.1']
    #allocation7 [shape = 'u8[512]{0}', space=vmem, size = 0x400, scoped, tag = 'input window, operand 19, single buffered']
    #allocation8 [shape = 'u8[32768]{0}', space=vmem, size = 0x8000, scoped, tag = 'input window, operand 20, single buffered']
    #allocation9 [shape = 's32[1]{0}', space=sflag, size = 0x4, scoped, tag = 'scoped memory for intent_classifier_forward.1']
    #allocation10 [shape = 'u8[262144]{0}', space=vmem, size = 0x40000, scoped, tag = 'input window, operand 22, single buffered']
    #allocation11 [shape = 'u8[1024]{0}', space=vmem, size = 0x400, scoped, tag = 'output window, operand 0, single buffered']
    %31 = vsyncpa [#allocation3], 0
    %32 = vsyncpa [#allocation6], 0
    %33 = vsyncpa [#allocation9], 0
    %34 = vsyncpa [#allocation4], 0
    // Predicated region
    $region2: #{intent_classifier_forward.1} parent=1 // pred_check
      _
    $region3: #{intent_classifier_forward.1} parent=1 // pred_check_branch
      %36 = sbr.rel (0) target = $region5
    $region4: #{intent_classifier_forward.1} parent=1 // pred_region
      _
    $region5: #{intent_classifier_forward.1} parent=1 // pred_fallthru
      _
    // Predicated region
    $region6: #{intent_classifier_forward.1} parent=1 // pred_check
      _
    $region7: #{intent_classifier_forward.1} parent=1 // pred_check_branch
      %38 = sbr.rel (0) target = $region9
    $region8: #{intent_classifier_forward.1} parent=1 // pred_region
      _
    $region9: #{intent_classifier_forward.1} parent=1 // pred_fallthru
      _
    // Predicated region
    $region10: #{intent_classifier_forward.1} parent=1 // pred_check
      _
    $region11: #{intent_classifier_forward.1} parent=1 // pred_check_branch
      %40 = sbr.rel (0) target = $region13
    $region12: #{intent_classifier_forward.1} parent=1 // pred_region
      _
    $region13: #{intent_classifier_forward.1} parent=1 // pred_fallthru
      _
    // Predicated region
    $region14: #{intent_classifier_forward.1} parent=1 // pred_check
      _
    $region15: #{intent_classifier_forward.1} parent=1 // pred_check_branch
      %42 = sbr.rel (0) target = $region17
    $region16: #{intent_classifier_forward.1} parent=1 // pred_region
      _
    $region17: #{intent_classifier_forward.1} parent=1 // pred_fallthru
      _
    // Predicated region
    $region18: #{intent_classifier_forward.1} parent=1 // pred_check
      _
    $region19: #{intent_classifier_forward.1} parent=1 // pred_check_branch
      %44 = sbr.rel (0) target = $region21
    $region20: #{intent_classifier_forward.1} parent=1 // pred_region
      _
    $region21: #{intent_classifier_forward.1} parent=1 // pred_fallthru
      _
    // Predicated region
    $region22: #{intent_classifier_forward.1} parent=1 // pred_check
      _
    $region23: #{intent_classifier_forward.1} parent=1 // pred_check_branch
      %46 = sbr.rel (0) target = $region25
    $region24: #{intent_classifier_forward.1} parent=1 // pred_region
      _
    $region25: #{intent_classifier_forward.1} parent=1 // pred_fallthru
      _
    // Predicated region
    $region26: #{intent_classifier_forward.1} parent=1 // pred_check
      _
    $region27: #{intent_classifier_forward.1} parent=1 // pred_check_branch
      %48 = sbr.rel (0) target = $region29
    $region28: #{intent_classifier_forward.1} parent=1 // pred_region
      _
    $region29: #{intent_classifier_forward.1} parent=1 // pred_fallthru
      _
    // Predicated region
    $region30: #{intent_classifier_forward.1} parent=1 // pred_check
      _
    $region31: #{intent_classifier_forward.1} parent=1 // pred_check_branch
      %50 = sbr.rel (0) target = $region33
    $region32: #{intent_classifier_forward.1} parent=1 // pred_region
      _
    $region33: #{intent_classifier_forward.1} parent=1 // pred_fallthru
      _
    // Predicated region
    $region34: #{intent_classifier_forward.1} parent=1 // pred_check
      _
    $region35: #{intent_classifier_forward.1} parent=1 // pred_check_branch
      %52 = sbr.rel (0) target = $region37
    $region36: #{intent_classifier_forward.1} parent=1 // pred_region
      _
    $region37: #{intent_classifier_forward.1} parent=1 // pred_fallthru
      _
    // Predicated region
    $region38: #{intent_classifier_forward.1} parent=1 // pred_check
      _
    $region39: #{intent_classifier_forward.1} parent=1 // pred_check_branch
      %54 = sbr.rel (0) target = $region41
    $region40: #{intent_classifier_forward.1} parent=1 // pred_region
      _
    $region41: #{intent_classifier_forward.1} parent=1 // pred_fallthru
      _
    // Predicated region
    $region42: #{intent_classifier_forward.1} parent=1 // pred_check
      _
    $region43: #{intent_classifier_forward.1} parent=1 // pred_check_branch
      %56 = sbr.rel (0) target = $region45
    $region44: #{intent_classifier_forward.1} parent=1 // pred_region
      _
    $region45: #{intent_classifier_forward.1} parent=1 // pred_fallthru
      _
    // Predicated region
    $region46: #{intent_classifier_forward.1} parent=1 // pred_check
      _
    $region47: #{intent_classifier_forward.1} parent=1 // pred_check_branch
      %58 = sbr.rel (0) target = $region49
    $region48: #{intent_classifier_forward.1} parent=1 // pred_region
      _
    $region49: #{intent_classifier_forward.1} parent=1 // pred_fallthru
      _
    // Predicated region
    $region50: #{intent_classifier_forward.1} parent=1 // pred_check
      _
    $region51: #{intent_classifier_forward.1} parent=1 // pred_check_branch
      %60 = sbr.rel (0) target = $region53
    $region52: #{intent_classifier_forward.1} parent=1 // pred_region
      _
    $region53: #{intent_classifier_forward.1} parent=1 // pred_fallthru
      _
    // Predicated region
    $region54: #{intent_classifier_forward.1} parent=1 // pred_check
      _
    $region55: #{intent_classifier_forward.1} parent=1 // pred_check_branch
      %62 = sbr.rel (0) target = $region57
    $region56: #{intent_classifier_forward.1} parent=1 // pred_region
      %64 = vsyncadd [#allocation3], 0
      %s66 = sshll.u32 %s13, 4
      %s67 = int_to_ptr.hbm [resolvable:$true] %s66
      %s68 = sshll.u32 [#allocation2], 4
      %s69 = int_to_ptr.vmem [resolvable:$true] %s68
      %71 = dma.hbm_to_vmem [thread:$0]  %s67, 16, %s69, [#allocation3]
    $region57: #{intent_classifier_forward.1} parent=1 // pred_fallthru
      _
    // Predicated region
    $region58: #{intent_classifier_forward.1} parent=1 // pred_check
      _
    $region59: #{intent_classifier_forward.1} parent=1 // pred_check_branch
      %73 = sbr.rel (0) target = $region61
    $region60: #{intent_classifier_forward.1} parent=1 // pred_region
      _
    $region61: #{intent_classifier_forward.1} parent=1 // pred_fallthru
      _
    // Predicated region
    $region62: #{intent_classifier_forward.1} parent=1 // pred_check
      _
    $region63: #{intent_classifier_forward.1} parent=1 // pred_check_branch
      %75 = sbr.rel (0) target = $region65
    $region64: #{intent_classifier_forward.1} parent=1 // pred_region
      %77 = vsyncadd [#allocation6], 0
      %s79 = sshll.u32 %s15, 4
      %s80 = int_to_ptr.hbm [resolvable:$true] %s79
      %s81 = sshll.u32 [#allocation5], 4
      %s82 = int_to_ptr.vmem [resolvable:$true] %s81
      %84 = dma.hbm_to_vmem [thread:$0]  %s80, 16, %s82, [#allocation6]
    $region65: #{intent_classifier_forward.1} parent=1 // pred_fallthru
      _
    // Predicated region
    $region66: #{intent_classifier_forward.1} parent=1 // pred_check
      _
    $region67: #{intent_classifier_forward.1} parent=1 // pred_check_branch
      %86 = sbr.rel (0) target = $region69
    $region68: #{intent_classifier_forward.1} parent=1 // pred_region
      _
    $region69: #{intent_classifier_forward.1} parent=1 // pred_fallthru
      _
    // Predicated region
    $region70: #{intent_classifier_forward.1} parent=1 // pred_check
      _
    $region71: #{intent_classifier_forward.1} parent=1 // pred_check_branch
      %88 = sbr.rel (0) target = $region73
    $region72: #{intent_classifier_forward.1} parent=1 // pred_region
      _
    $region73: #{intent_classifier_forward.1} parent=1 // pred_fallthru
      _
    // Predicated region
    $region74: #{intent_classifier_forward.1} parent=1 // pred_check
      _
    $region75: #{intent_classifier_forward.1} parent=1 // pred_check_branch
      %90 = sbr.rel (0) target = $region77
    $region76: #{intent_classifier_forward.1} parent=1 // pred_region
      _
    $region77: #{intent_classifier_forward.1} parent=1 // pred_fallthru
      _
    // Predicated region
    $region78: #{intent_classifier_forward.1} parent=1 // pred_check
      _
    $region79: #{intent_classifier_forward.1} parent=1 // pred_check_branch
      %92 = sbr.rel (0) target = $region81
    $region80: #{intent_classifier_forward.1} parent=1 // pred_region
      %94 = vsyncadd [#allocation6], 0
      %s96 = sshll.u32 %s19, 4
      %s97 = int_to_ptr.hbm [resolvable:$true] %s96
      %s98 = sshll.u32 [#allocation7], 4
      %s99 = int_to_ptr.vmem [resolvable:$true] %s98
      %101 = dma.hbm_to_vmem [thread:$0]  %s97, 16, %s99, [#allocation6]
    $region81: #{intent_classifier_forward.1} parent=1 // pred_fallthru
      _
    // Predicated region
    $region82: #{intent_classifier_forward.1} parent=1 // pred_check
      _
    $region83: #{intent_classifier_forward.1} parent=1 // pred_check_branch
      %103 = sbr.rel (0) target = $region85
    $region84: #{intent_classifier_forward.1} parent=1 // pred_region
      %105 = vsyncadd [#allocation9], 0
      %s106 = sshll.u32 %s20, 4
      %s107 = int_to_ptr.hbm [resolvable:$true] %s106
      %s108 = sshll.u32 [#allocation8], 4
      %s109 = int_to_ptr.vmem [resolvable:$true] %s108
      %114 = dma.hbm_to_vmem [thread:$0]  %s107, 1024, %s109, [#allocation9], 256, 256, 16
    $region85: #{intent_classifier_forward.1} parent=1 // pred_fallthru
      _
    // Predicated region
    $region86: #{intent_classifier_forward.1} parent=1 // pred_check
      _
    $region87: #{intent_classifier_forward.1} parent=1 // pred_check_branch
      %116 = sbr.rel (0) target = $region89
    $region88: #{intent_classifier_forward.1} parent=1 // pred_region
      _
    $region89: #{intent_classifier_forward.1} parent=1 // pred_fallthru
      _
    // Predicated region
    $region90: #{intent_classifier_forward.1} parent=1 // pred_check
      _
    $region91: #{intent_classifier_forward.1} parent=1 // pred_check_branch
      %118 = sbr.rel (0) target = $region93
    $region92: #{intent_classifier_forward.1} parent=1 // pred_region
      %120 = vsyncadd [#allocation9], 0
      %s121 = sshll.u32 %s22, 4
      %s122 = int_to_ptr.hbm [resolvable:$true] %s121
      %s123 = sshll.u32 [#allocation10], 4
      %s124 = int_to_ptr.vmem [resolvable:$true] %s123
      %129 = dma.hbm_to_vmem [thread:$0]  %s122, 8192, %s124, [#allocation9], 128, 128, 8
    $region93: #{intent_classifier_forward.1} parent=1 // pred_fallthru
      _
    // Predicated region
    $region94: #{intent_classifier_forward.1} parent=1 // pred_check
      _
    $region95: #{intent_classifier_forward.1} parent=1 // pred_check_branch
      %131 = sbr.rel (0) target = $region97
    $region96: #{intent_classifier_forward.1} parent=1 // pred_region
      _
    $region97: #{intent_classifier_forward.1} parent=1 // pred_fallthru
      _
    // Predicated region
    $region98: #{intent_classifier_forward.1} parent=1 // pred_check
      _
    $region99: #{intent_classifier_forward.1} parent=1 // pred_check_branch
      %133 = sbr.rel (0) target = $region101
    $region100: #{intent_classifier_forward.1} parent=1 // pred_region
      _
    $region101: #{intent_classifier_forward.1} parent=1 // pred_fallthru
      _
    // Predicated region
    $region102: #{intent_classifier_forward.1} parent=1 // pred_check
      _
    $region103: #{intent_classifier_forward.1} parent=1 // pred_check_branch
      %135 = sbr.rel (0) target = $region105
    $region104: #{intent_classifier_forward.1} parent=1 // pred_region
      _
    $region105: #{intent_classifier_forward.1} parent=1 // pred_fallthru
      _
    // Predicated region
    $region106: #{intent_classifier_forward.1} parent=1 // pred_check
      _
    $region107: #{intent_classifier_forward.1} parent=1 // pred_check_branch
      %137 = sbr.rel (0) target = $region109
    $region108: #{intent_classifier_forward.1} parent=1 // pred_region
      %139 = dma.done [#allocation3], 16
    $region109: #{intent_classifier_forward.1} parent=1 // pred_fallthru
      _
    // Predicated region
    $region110: #{intent_classifier_forward.1} parent=1 // pred_check
      _
    $region111: #{intent_classifier_forward.1} parent=1 // pred_check_branch
      %141 = sbr.rel (0) target = $region113
    $region112: #{intent_classifier_forward.1} parent=1 // pred_region
      %143 = dma.done [#allocation6], 16
    $region113: #{intent_classifier_forward.1} parent=1 // pred_fallthru
      _
    // Predicated region
    $region114: #{intent_classifier_forward.1} parent=1 // pred_check
      _
    $region115: #{intent_classifier_forward.1} parent=1 // pred_check_branch
      %145 = sbr.rel (0) target = $region117
    $region116: #{intent_classifier_forward.1} parent=1 // pred_region
      %147 = dma.done [#allocation6], 16
    $region117: #{intent_classifier_forward.1} parent=1 // pred_fallthru
      _
    // Predicated region
    $region118: #{intent_classifier_forward.1} parent=1 // pred_check
      _
    $region119: #{intent_classifier_forward.1} parent=1 // pred_check_branch
      %149 = sbr.rel (0) target = $region121
    $region120: #{intent_classifier_forward.1} parent=1 // pred_region
      %151 = dma.done [#allocation9], 1024
    $region121: #{intent_classifier_forward.1} parent=1 // pred_fallthru
      _
    // Predicated region
    $region122: #{intent_classifier_forward.1} parent=1 // pred_check
      _
    $region123: #{intent_classifier_forward.1} parent=1 // pred_check_branch
      %153 = sbr.rel (0) target = $region125
    $region124: #{intent_classifier_forward.1} parent=1 // pred_region
      %155 = dma.done [#allocation9], 8192
    $region125: #{intent_classifier_forward.1} parent=1 // pred_fallthru
      _
    %v157 = vld [vmem:[%s0] sm:$0xff]
    %v158 = vld [vmem:[%s0 + $0x8] sm:$0xff]
    %v159 = vlaneseq
    %v160 = vand.u32 %v159, 127
    %161 = vset.pattern.permute.xlu0 0
    %162 = vperm.xlu0 %161, %v157
    %v163 = vpop.permute.xlu0 %162
    %164 = vset.pattern.permute.xlu0 0
    %165 = vperm.xlu0 %164, %v158
    %v166 = vpop.permute.xlu0 %165
    %vm167 = vcmp.eq.s32.totalorder %v160, %v163
    %vm168 = vcmp.eq.s32.totalorder %v160, %v166
    %v169 = vsel %vm167, 1, 0
    %v170 = vsel %vm168, 1, 0
    %v171 = vcvt.s32.f32 %v169
    %v172 = vcvt.s32.f32 %v170
    %v173 = vld [vmem:[%s1] sm:$0xff]
    %v174 = vld [vmem:[%s1 + $0x8] sm:$0xff]
    %v175 = vld [vmem:[%s1 + $0x10] sm:$0xff]
    %v176 = vld [vmem:[%s1 + $0x18] sm:$0xff]
    %v177 = vld [vmem:[%s1 + $0x20] sm:$0xff]
    %v178 = vld [vmem:[%s1 + $0x28] sm:$0xff]
    %v179 = vld [vmem:[%s1 + $0x30] sm:$0xff]
    %v180 = vld [vmem:[%s1 + $0x38] sm:$0xff]
    %v181 = vld [vmem:[%s2] sm:$0xff]
    %v182 = vld [vmem:[%s2 + $0x8] sm:$0xff]
    %vm183 = vcmask 523264
    %v185 = vsel %vm183, %v171, 0
    %v188 = vsel %vm183, %v172, 0
    %190 = vmatpush.msra.mxu0 0.0
    %191 = vmatpush.msra.mxu0 0.0
    %192 = vmatpush.msra.mxu0 0.0
    %193 = vmatpush.msra.mxu0 0.0
    %194 = vmatpush.msra.mxu0 0.0
    %195 = vmatpush.msra.mxu0 0.0
    %196 = vmatpush.msra.mxu0 0.0
    %197 = vmatpush.msra.mxu0 0.0
    %198 = vmatpush.msra.mxu0 %v180
    %199 = vmatpush.msra.mxu0 %v179
    %200 = vmatpush.msra.mxu0 %v178
    %201 = vmatpush.msra.mxu0 %v177
    %202 = vmatpush.msra.mxu0 %v176
    %203 = vmatpush.msra.mxu0 %v175
    %204 = vmatpush.msra.mxu0 %v174
    %205 = vmatpush.msra.mxu0 %v173
    %206 = vmatmul.f32.gmra.mxu0 %v185
    %v207 = vpop.f32.mrf.mxu0
    %v208 = vadd.f32 %v181, %v207
    %209 = vmatmul.f32.gmra.mxu0 %v188
    %v210 = vpop.f32.mrf.mxu0
    %v211 = vadd.f32 %v182, %v210
    %212 = vdwg.mxu0
    %v213 = vld [vmem:[%s3] sm:$0xff]
    %v214 = vld [vmem:[%s3 + $0x8] sm:$0xff]
    %v215 = vld [vmem:[%s4] sm:$0x1]
    %v216 = vld [vmem:[%s5] sm:$0x1]
    %vm217 = vcmask 261120
    %v218 = vsel %vm217, %v208, 0.0
    %219 = vadd.xlane.f32.xlu0 %v218
    %v220 = vpop.xlane.xlu0 %219
    %v221 = vsel %vm217, %v211, 0.0
    %222 = vadd.xlane.f32.xlu0 %v221
    %v223 = vpop.xlane.xlu0 %222
    %v224 = vrcp.pop 32.0
    %v225 = vmul.f32 32.0, %v224
    %v226 = vsub.f32 1.0, %v225
    %v227 = vmul.f32 %v224, %v226
    %v228 = vadd.f32 %v224, %v227
    %vm229 = vweird.f32 %v224
    %v230 = vsel %vm229, %v224, %v228
    %v231 = vmul.f32 %v220, %v230
    %v232 = vmul.f32 %v223, %v230
    %v233 = vsub.f32 %v208, %v231
    %v234 = vsub.f32 %v211, %v232
    %v235 = vmul.f32 %v233, %v233
    %v236 = vmul.f32 %v234, %v234
    %v237 = vsel %vm217, %v235, 0.0
    %238 = vadd.xlane.f32.xlu0 %v237
    %v239 = vpop.xlane.xlu0 %238
    %v240 = vsel %vm217, %v236, 0.0
    %241 = vadd.xlane.f32.xlu0 %v240
    %v242 = vpop.xlane.xlu0 %241
    %v243 = vmul.f32 %v239, %v230
    %v244 = vmul.f32 %v242, %v230
    %v245 = vadd.f32 %v243, 1e-12
    %v246 = vadd.f32 %v244, 1e-12
    %v247 = vrsqrt.pop %v245
    %v248 = vmul.f32 %v247, %v245
    %v249 = vmul.f32 %v248, %v247
    %v250 = vmul.f32 0.5, %v249
    %v251 = vsub.f32 1.5, %v250
    %v252 = vmul.f32 %v247, %v251
    %vm253 = vweird.f32 %v245
    %vm254 = vweird.f32 %v247
    %vm255 = vmor %vm253, %vm254
    %v256 = vsel %vm255, %v247, %v252
    %v257 = vrsqrt.pop %v246
    %v258 = vmul.f32 %v257, %v246
    %v259 = vmul.f32 %v258, %v257
    %v260 = vmul.f32 0.5, %v259
    %v261 = vsub.f32 1.5, %v260
    %v262 = vmul.f32 %v257, %v261
    %vm263 = vweird.f32 %v246
    %vm264 = vweird.f32 %v257
    %vm265 = vmor %vm263, %vm264
    %v266 = vsel %vm265, %v257, %v262
    %v267 = vmul.f32 %v233, %v256
    %v268 = vmul.f32 %v234, %v266
    %v270 = vperm.slane %v215, 0
    %v272 = vmul.f32 %v267, %v270
    %v273 = vmul.f32 %v268, %v270
    %v275 = vperm.slane %v216, 0
    %v277 = vadd.f32 %v272, %v275
    %v278 = vadd.f32 %v273, %v275
    %v279 = vld [vmem:[%s6] sm:$0xf]
    %v280 = vld [vmem:[%s6 + $0x4] sm:$0xf]
    %v281 = vld [vmem:[%s6 + $0x8] sm:$0xf]
    %v282 = vld [vmem:[%s6 + $0xc] sm:$0xf]
    %v283 = vpack.c.bf16 %v278, %v277
    %v284 = vld [vmem:[%s7] sm:$0x1]
    %v286 = vperm.slane %v284, 0
    %v292 = vunpack.c.l.b16 %v279
    %v293 = vunpack.c.l.b16 %v280
    %v294 = vunpack.c.l.b16 %v281
    %v295 = vunpack.c.l.b16 %v282
    %v296 = vpack.c.b16 %v293, %v292
    %v297 = vpack.c.b16 %v295, %v294
    %v301 = vsel %vm217, %v283, 0
    %303 = vmatpush.bf16.msra.mxu0 0
    %304 = vmatpush.bf16.msra.mxu0 0
    %305 = vmatpush.bf16.msra.mxu0 0
    %306 = vmatpush.bf16.msra.mxu0 0
    %307 = vmatpush.bf16.msra.mxu0 0
    %308 = vmatpush.bf16.msra.mxu0 0
    %309 = vmatpush.bf16.msra.mxu0 %v297
    %310 = vmatpush.bf16.msra.mxu0 %v296
    %311 = vmatmul.bf16.gmra.mxu0 %v301
    %v312 = vpop.f32.mrf.mxu0
    %v313 = vadd.f32 %v286, %v312
    %v314 = vpop.f32.mrf.mxu0
    %v315 = vadd.f32 %v286, %v314
    %316 = vdwg.mxu0
    %v317 = vpack.c.bf16 %v315, %v313
    %319 = vrot.lane.b32.xlu0 %v317, 96
    %v320 = vpop.permute.xlu0 %319
    %v322 = vsel %vm217, %v317, 0
    %v325 = vsel %vm217, %v320, 0
    %327 = vmatpush.bf16.xpose.msra.mxu0 0
    %328 = vmatpush.bf16.xpose.msra.mxu0 0
    %329 = vmatpush.bf16.xpose.msra.mxu0 0
    %330 = vmatpush.bf16.xpose.msra.mxu0 0
    %331 = vmatpush.bf16.xpose.msra.mxu0 0
    %332 = vmatpush.bf16.xpose.msra.mxu0 0
    %333 = vmatpush.bf16.xpose.msra.mxu0 0
    %334 = vmatpush.bf16.xpose.msra.mxu0 %v325
    %335 = vmatmul.bf16.gmra.mxu0 %v322
    %v336 = vpop.f32.mrf.mxu0
    %v337 = vadd.f32 0.0, %v336
    %v338 = vpop.f32.mrf.mxu0
    %v339 = vadd.f32 0.0, %v338
    %340 = vdwg.mxu0
    %v341 = vmul.f32 %v337, 0.17677669
    %v342 = vmul.f32 %v339, 0.17677669
    %v343 = vadd.f32 %v341, %v213
    %v344 = vadd.f32 %v342, %v214
    %vm345 = vcmask 130048
    %v346 = vsel %vm345, %v343, -inf
    %347 = vmax.xlane.f32.xlu0 %v346
    %v348 = vpop.xlane.xlu0 %347
    %v349 = vsel %vm345, %v344, -inf
    %350 = vmax.xlane.f32.xlu0 %v349
    %v351 = vpop.xlane.xlu0 %350
    %v352 = vsub.f32 %v343, %v348
    %v353 = vsub.f32 %v344, %v351
    %v354 = vmul.f32 %v352, 1.442695
    %v355 = vpow.pop %v354
    %v356 = vmul.f32 %v353, 1.442695
    %v357 = vpow.pop %v356
    %v358 = vsel %vm345, %v355, 0.0
    %359 = vadd.xlane.f32.xlu0 %v358
    %v360 = vpop.xlane.xlu0 %359
    %v361 = vsel %vm345, %v357, 0.0
    %362 = vadd.xlane.f32.xlu0 %v361
    %v363 = vpop.xlane.xlu0 %362
    %v364 = vrcp.pop %v360
    %v365 = vmul.f32 %v360, %v364
    %v366 = vsub.f32 1.0, %v365
    %v367 = vmul.f32 %v364, %v366
    %v368 = vadd.f32 %v364, %v367
    %vm369 = vweird.f32 %v360
    %vm370 = vweird.f32 %v364
    %vm371 = vmor %vm369, %vm370
    %v372 = vsel %vm371, %v364, %v368
    %v373 = vand.u32 2147483647, %v360
    %vm374 = vcmp.eq.f32.partialorder %v373, 8.507059e+37
    %v375 = vand.u32 %v360, 2147483648
    %v376 = vor.u32 1.1754944e-38, %v375
    %v377 = vsel %vm374, %v376, %v372
    %v378 = vmul.f32 %v355, %v377
    %v379 = vrcp.pop %v363
    %v380 = vmul.f32 %v363, %v379
    %v381 = vsub.f32 1.0, %v380
    %v382 = vmul.f32 %v379, %v381
    %v383 = vadd.f32 %v379, %v382
    %vm384 = vweird.f32 %v363
    %vm385 = vweird.f32 %v379
    %vm386 = vmor %vm384, %vm385
    %v387 = vsel %vm386, %v379, %v383
    %v388 = vand.u32 2147483647, %v363
    %vm389 = vcmp.eq.f32.partialorder %v388, 8.507059e+37
    %v390 = vand.u32 %v363, 2147483648
    %v391 = vor.u32 1.1754944e-38, %v390
    %v392 = vsel %vm389, %v391, %v387
    %v393 = vmul.f32 %v357, %v392
    %v394 = vpack.c.bf16 %v393, %v378
    %395 = vrot.lane.b32.xlu0 %v317, 64
    %v396 = vpop.permute.xlu0 %395
    %v399 = vsel %vm345, %v394, 0
    %401 = vmatpush.bf16.msra.mxu0 0
    %402 = vmatpush.bf16.msra.mxu0 0
    %403 = vmatpush.bf16.msra.mxu0 0
    %404 = vmatpush.bf16.msra.mxu0 0
    %405 = vmatpush.bf16.msra.mxu0 0
    %406 = vmatpush.bf16.msra.mxu0 0
    %407 = vmatpush.bf16.msra.mxu0 0
    %408 = vmatpush.bf16.msra.mxu0 %v396
    %409 = vmatmul.bf16.gmra.mxu0 %v399
    %v410 = vpop.f32.mrf.mxu0
    %v411 = vadd.f32 0.0, %v410
    %v412 = vpop.f32.mrf.mxu0
    %v413 = vadd.f32 0.0, %v412
    %414 = vdwg.mxu0
    %v415 = vld [vmem:[%s8] sm:$0xf]
    %v416 = vld [vmem:[%s8 + $0x4] sm:$0xf]
    %v417 = vld [vmem:[%s8 + $0x8] sm:$0xf]
    %v418 = vld [vmem:[%s8 + $0xc] sm:$0xf]
    %v419 = vpack.c.bf16 %v413, %v411
    %v424 = vunpack.c.l.b16 %v415
    %v425 = vunpack.c.l.b16 %v416
    %v426 = vunpack.c.l.b16 %v417
    %v427 = vunpack.c.l.b16 %v418
    %v428 = vpack.c.b16 %v425, %v424
    %v429 = vpack.c.b16 %v427, %v426
    %v433 = vsel %vm217, %v419, 0
    %435 = vmatpush.bf16.msra.mxu0 0
    %436 = vmatpush.bf16.msra.mxu0 0
    %437 = vmatpush.bf16.msra.mxu0 0
    %438 = vmatpush.bf16.msra.mxu0 0
    %439 = vmatpush.bf16.msra.mxu0 0
    %440 = vmatpush.bf16.msra.mxu0 0
    %441 = vmatpush.bf16.msra.mxu0 %v429
    %442 = vmatpush.bf16.msra.mxu0 %v428
    %443 = vmatmul.bf16.gmra.mxu0 %v433
    %v444 = vpop.f32.mrf.mxu0
    %v445 = vadd.f32 0.0, %v444
    %v446 = vpop.f32.mrf.mxu0
    %v447 = vadd.f32 0.0, %v446
    %448 = vdwg.mxu0
    %v449 = vadd.f32 %v277, %v445
    %v450 = vadd.f32 %v278, %v447
    %v451 = vld [vmem:[%s9] sm:$0x1]
    %v453 = vperm.slane %v451, 0
    %v455 = vadd.f32 %v449, %v453
    %v456 = vadd.f32 %v450, %v453
    %v457 = vld [vmem:[%s10] sm:$0x1]
    %v458 = vld [vmem:[%s11] sm:$0x1]
    %v459 = vsel %vm217, %v455, 0.0
    %460 = vadd.xlane.f32.xlu0 %v459
    %v461 = vpop.xlane.xlu0 %460
    %v462 = vsel %vm217, %v456, 0.0
    %463 = vadd.xlane.f32.xlu0 %v462
    %v464 = vpop.xlane.xlu0 %463
    %v465 = vmul.f32 %v461, %v230
    %v466 = vmul.f32 %v464, %v230
    %v467 = vsub.f32 %v455, %v465
    %v468 = vsub.f32 %v456, %v466
    %v469 = vmul.f32 %v467, %v467
    %v470 = vmul.f32 %v468, %v468
    %v471 = vsel %vm217, %v469, 0.0
    %472 = vadd.xlane.f32.xlu0 %v471
    %v473 = vpop.xlane.xlu0 %472
    %v474 = vsel %vm217, %v470, 0.0
    %475 = vadd.xlane.f32.xlu0 %v474
    %v476 = vpop.xlane.xlu0 %475
    %v477 = vmul.f32 %v473, %v230
    %v478 = vmul.f32 %v476, %v230
    %v479 = vadd.f32 %v477, 1e-12
    %v480 = vadd.f32 %v478, 1e-12
    %v481 = vrsqrt.pop %v479
    %v482 = vmul.f32 %v481, %v479
    %v483 = vmul.f32 %v482, %v481
    %v484 = vmul.f32 0.5, %v483
    %v485 = vsub.f32 1.5, %v484
    %v486 = vmul.f32 %v481, %v485
    %vm487 = vweird.f32 %v479
    %vm488 = vweird.f32 %v481
    %vm489 = vmor %vm487, %vm488
    %v490 = vsel %vm489, %v481, %v486
    %v491 = vrsqrt.pop %v480
    %v492 = vmul.f32 %v491, %v480
    %v493 = vmul.f32 %v492, %v491
    %v494 = vmul.f32 0.5, %v493
    %v495 = vsub.f32 1.5, %v494
    %v496 = vmul.f32 %v491, %v495
    %vm497 = vweird.f32 %v480
    %vm498 = vweird.f32 %v491
    %vm499 = vmor %vm497, %vm498
    %v500 = vsel %vm499, %v491, %v496
    %v501 = vmul.f32 %v467, %v490
    %v502 = vmul.f32 %v468, %v500
    %v504 = vperm.slane %v457, 0
    %v506 = vmul.f32 %v501, %v504
    %v507 = vmul.f32 %v502, %v504
    %v509 = vperm.slane %v458, 0
    %v511 = vadd.f32 %v506, %v509
    %v512 = vadd.f32 %v507, %v509
    %v513 = vld [vmem:[%s12] sm:$0xf]
    %v514 = vld [vmem:[%s12 + $0x4] sm:$0xf]
    %v515 = vld [vmem:[%s12 + $0x8] sm:$0xf]
    %v516 = vld [vmem:[%s12 + $0xc] sm:$0xf]
    %v517 = vpack.c.bf16 %v512, %v511
    %v518 = vld [vmem:[#allocation2] sm:$0x1]
    %v520 = vperm.slane %v518, 0
    %v526 = vunpack.c.l.b16 %v513
    %v527 = vunpack.c.l.b16 %v514
    %v528 = vunpack.c.l.b16 %v515
    %v529 = vunpack.c.l.b16 %v516
    %v530 = vpack.c.b16 %v527, %v526
    %v531 = vpack.c.b16 %v529, %v528
    %v535 = vsel %vm217, %v517, 0
    %537 = vmatpush.bf16.msra.mxu0 0
    %538 = vmatpush.bf16.msra.mxu0 0
    %539 = vmatpush.bf16.msra.mxu0 0
    %540 = vmatpush.bf16.msra.mxu0 0
    %541 = vmatpush.bf16.msra.mxu0 0
    %542 = vmatpush.bf16.msra.mxu0 0
    %543 = vmatpush.bf16.msra.mxu0 %v531
    %544 = vmatpush.bf16.msra.mxu0 %v530
    %545 = vmatmul.bf16.gmra.mxu0 %v535
    %v546 = vpop.f32.mrf.mxu0
    %v547 = vadd.f32 %v520, %v546
    %v548 = vpop.f32.mrf.mxu0
    %v549 = vadd.f32 %v520, %v548
    %550 = vdwg.mxu0
    %v551 = vmul.f32 %v547, %v547
    %v552 = vmul.f32 %v549, %v549
    %v553 = vmul.f32 %v547, %v551
    %v554 = vmul.f32 %v549, %v552
    %v555 = vmul.f32 %v553, 0.044715
    %v556 = vmul.f32 %v554, 0.044715
    %v557 = vadd.f32 %v547, %v555
    %v558 = vadd.f32 %v549, %v556
    %v559 = vmul.f32 %v557, 0.7978846
    %v560 = vmul.f32 %v558, 0.7978846
    %v561 = vtanh.pop %v559
    %v562 = vtanh.pop %v560
    %v563 = vadd.f32 %v561, 1.0
    %v564 = vadd.f32 %v562, 1.0
    %v565 = vmul.f32 %v563, 0.5
    %v566 = vmul.f32 %v564, 0.5
    %v567 = vmul.f32 %v547, %v565
    %v568 = vmul.f32 %v549, %v566
    %v569 = vld [vmem:[%s14] sm:$0xf]
    %v570 = vld [vmem:[%s14 + $0x4] sm:$0xf]
    %v571 = vld [vmem:[%s14 + $0x8] sm:$0xf]
    %v572 = vld [vmem:[%s14 + $0xc] sm:$0xf]
    %v573 = vld [vmem:[%s14 + $0x10] sm:$0xf]
    %v574 = vld [vmem:[%s14 + $0x14] sm:$0xf]
    %v575 = vld [vmem:[%s14 + $0x18] sm:$0xf]
    %v576 = vld [vmem:[%s14 + $0x1c] sm:$0xf]
    %v577 = vld [vmem:[%s14 + $0x20] sm:$0xf]
    %v578 = vld [vmem:[%s14 + $0x24] sm:$0xf]
    %v579 = vld [vmem:[%s14 + $0x28] sm:$0xf]
    %v580 = vld [vmem:[%s14 + $0x2c] sm:$0xf]
    %v581 = vld [vmem:[%s14 + $0x30] sm:$0xf]
    %v582 = vld [vmem:[%s14 + $0x34] sm:$0xf]
    %v583 = vld [vmem:[%s14 + $0x38] sm:$0xf]
    %v584 = vld [vmem:[%s14 + $0x3c] sm:$0xf]
    %v585 = vpack.c.bf16 %v568, %v567
    %v602 = vunpack.c.l.b16 %v569
    %v603 = vunpack.c.l.b16 %v570
    %v604 = vunpack.c.l.b16 %v571
    %v605 = vunpack.c.l.b16 %v572
    %v606 = vunpack.c.l.b16 %v573
    %v607 = vunpack.c.l.b16 %v574
    %v608 = vunpack.c.l.b16 %v575
    %v609 = vunpack.c.l.b16 %v576
    %v610 = vunpack.c.l.b16 %v577
    %v611 = vunpack.c.l.b16 %v578
    %v612 = vunpack.c.l.b16 %v579
    %v613 = vunpack.c.l.b16 %v580
    %v614 = vunpack.c.l.b16 %v581
    %v615 = vunpack.c.l.b16 %v582
    %v616 = vunpack.c.l.b16 %v583
    %v617 = vunpack.c.l.b16 %v584
    %v618 = vpack.c.b16 %v603, %v602
    %v619 = vpack.c.b16 %v605, %v604
    %v620 = vpack.c.b16 %v607, %v606
    %v621 = vpack.c.b16 %v609, %v608
    %v622 = vpack.c.b16 %v611, %v610
    %v623 = vpack.c.b16 %v613, %v612
    %v624 = vpack.c.b16 %v615, %v614
    %v625 = vpack.c.b16 %v617, %v616
    %634 = vmatpush.bf16.msra.mxu0 %v625
    %635 = vmatpush.bf16.msra.mxu0 %v624
    %636 = vmatpush.bf16.msra.mxu0 %v623
    %637 = vmatpush.bf16.msra.mxu0 %v622
    %638 = vmatpush.bf16.msra.mxu0 %v621
    %639 = vmatpush.bf16.msra.mxu0 %v620
    %640 = vmatpush.bf16.msra.mxu0 %v619
    %641 = vmatpush.bf16.msra.mxu0 %v618
    %642 = vmatmul.bf16.gmra.mxu0 %v585
    %v643 = vpop.f32.mrf.mxu0
    %v644 = vadd.f32 0.0, %v643
    %v645 = vpop.f32.mrf.mxu0
    %v646 = vadd.f32 0.0, %v645
    %647 = vdwg.mxu0
    %v648 = vadd.f32 %v511, %v644
    %v649 = vadd.f32 %v512, %v646
    %v650 = vld [vmem:[#allocation5] sm:$0x1]
    %v652 = vperm.slane %v650, 0
    %v654 = vadd.f32 %v648, %v652
    %v655 = vadd.f32 %v649, %v652
    %v656 = vld [vmem:[%s16] sm:$0x1]
    %v657 = vld [vmem:[%s17] sm:$0x1]
    %v658 = vsel %vm217, %v654, 0.0
    %659 = vadd.xlane.f32.xlu0 %v658
    %v660 = vpop.xlane.xlu0 %659
    %v661 = vsel %vm217, %v655, 0.0
    %662 = vadd.xlane.f32.xlu0 %v661
    %v663 = vpop.xlane.xlu0 %662
    %v664 = vmul.f32 %v660, %v230
    %v665 = vmul.f32 %v663, %v230
    %v666 = vsub.f32 %v654, %v664
    %v667 = vsub.f32 %v655, %v665
    %v668 = vmul.f32 %v666, %v666
    %v669 = vmul.f32 %v667, %v667
    %v670 = vsel %vm217, %v668, 0.0
    %671 = vadd.xlane.f32.xlu0 %v670
    %v672 = vpop.xlane.xlu0 %671
    %v673 = vsel %vm217, %v669, 0.0
    %674 = vadd.xlane.f32.xlu0 %v673
    %v675 = vpop.xlane.xlu0 %674
    %v676 = vmul.f32 %v672, %v230
    %v677 = vmul.f32 %v675, %v230
    %v678 = vadd.f32 %v676, 1e-12
    %v679 = vadd.f32 %v677, 1e-12
    %v680 = vrsqrt.pop %v678
    %v681 = vmul.f32 %v680, %v678
    %v682 = vmul.f32 %v681, %v680
    %v683 = vmul.f32 0.5, %v682
    %v684 = vsub.f32 1.5, %v683
    %v685 = vmul.f32 %v680, %v684
    %vm686 = vweird.f32 %v678
    %vm687 = vweird.f32 %v680
    %vm688 = vmor %vm686, %vm687
    %v689 = vsel %vm688, %v680, %v685
    %v690 = vrsqrt.pop %v679
    %v691 = vmul.f32 %v690, %v679
    %v692 = vmul.f32 %v691, %v690
    %v693 = vmul.f32 0.5, %v692
    %v694 = vsub.f32 1.5, %v693
    %v695 = vmul.f32 %v690, %v694
    %vm696 = vweird.f32 %v679
    %vm697 = vweird.f32 %v690
    %vm698 = vmor %vm696, %vm697
    %v699 = vsel %vm698, %v690, %v695
    %v700 = vmul.f32 %v666, %v689
    %v701 = vmul.f32 %v667, %v699
    %v703 = vperm.slane %v656, 0
    %v705 = vmul.f32 %v700, %v703
    %v706 = vmul.f32 %v701, %v703
    %v708 = vperm.slane %v657, 0
    %v710 = vadd.f32 %v705, %v708
    %v711 = vadd.f32 %v706, %v708
    %v712 = vlaneseq
    %v713 = vshrl.u32 %v712, 7
    %v714 = vmul.u32 %v713, 8
    %vm715 = vcmp.eq.s32.totalorder %v160, %v714
    %v716 = vsel %vm715, 1, 0
    %v717 = vcvt.s32.f32 %v716
    %v719 = vsel %vm345, %v717, 0
    %721 = vmatpush.msra.mxu0 0.0
    %722 = vmatpush.msra.mxu0 0.0
    %723 = vmatpush.msra.mxu0 0.0
    %724 = vmatpush.msra.mxu0 0.0
    %725 = vmatpush.msra.mxu0 0.0
    %726 = vmatpush.msra.mxu0 0.0
    %727 = vmatpush.msra.mxu0 0.0
    %728 = vmatpush.msra.mxu0 0.0
    %729 = vmatpush.msra.mxu0 0.0
    %730 = vmatpush.msra.mxu0 0.0
    %731 = vmatpush.msra.mxu0 0.0
    %732 = vmatpush.msra.mxu0 0.0
    %733 = vmatpush.msra.mxu0 0.0
    %734 = vmatpush.msra.mxu0 0.0
    %735 = vmatpush.msra.mxu0 %v711
    %736 = vmatpush.msra.mxu0 %v710
    %737 = vmatmul.f32.gmra.mxu0 %v719
    %v738 = vpop.f32.mrf.mxu0
    %v739 = vadd.f32 0.0, %v738
    %740 = vdwg.mxu0
    %v741 = vld [vmem:[%s18] sm:$0xf]
    %v742 = vld [vmem:[%s18 + $0x4] sm:$0xf]
    %v743 = vld [vmem:[%s18 + $0x8] sm:$0xf]
    %v744 = vld [vmem:[%s18 + $0xc] sm:$0xf]
    %v745 = vpack.c.bf16 %v739, %v739
    %v746 = vld [vmem:[#allocation7] sm:$0x1]
    %v748 = vperm.slane %v746, 0
    %v754 = vunpack.c.l.b16 %v741
    %v755 = vunpack.c.l.b16 %v742
    %v756 = vunpack.c.l.b16 %v743
    %v757 = vunpack.c.l.b16 %v744
    %v758 = vpack.c.b16 %v755, %v754
    %v759 = vpack.c.b16 %v757, %v756
    %v763 = vsel %vm217, %v745, 0
    %765 = vmatpush.bf16.msra.mxu0 0
    %766 = vmatpush.bf16.msra.mxu0 0
    %767 = vmatpush.bf16.msra.mxu0 0
    %768 = vmatpush.bf16.msra.mxu0 0
    %769 = vmatpush.bf16.msra.mxu0 0
    %770 = vmatpush.bf16.msra.mxu0 0
    %771 = vmatpush.bf16.msra.mxu0 %v759
    %772 = vmatpush.bf16.msra.mxu0 %v758
    %773 = vmatmul.bf16.gmra.mxu0 %v763
    %v774 = vpop.f32.mrf.mxu0
    %v775 = vadd.f32 %v748, %v774
    %v776 = vpop.f32.mrf.mxu0
    %777 = vdwg.mxu0
    %v778 = vtanh.pop %v775
    %v779 = vld [vmem:[#allocation8] sm:$0xff]
    %v780 = vld [vmem:[#allocation8 + $0x8] sm:$0xff]
    %v781 = vld [vmem:[#allocation8 + $0x10] sm:$0xff]
    %v782 = vld [vmem:[#allocation8 + $0x18] sm:$0xff]
    %v783 = vld [vmem:[#allocation8 + $0x20] sm:$0xff]
    %v784 = vld [vmem:[#allocation8 + $0x28] sm:$0xff]
    %v785 = vld [vmem:[#allocation8 + $0x30] sm:$0xff]
    %v786 = vld [vmem:[#allocation8 + $0x38] sm:$0xff]
    %v787 = vpack.c.bf16 %v778, %v778
    %v788 = vld [vmem:[%s21] sm:$0xf]
    %v790 = vperm.slane %v788, 0
    %v791 = vperm.slane %v788, 1
    %v792 = vperm.slane %v788, 2
    %v793 = vperm.slane %v788, 3
    %v806 = vunpack.c.l.b16 %v779
    %v807 = vunpack.c.h.b16 %v779
    %v808 = vunpack.c.l.b16 %v780
    %v809 = vunpack.c.h.b16 %v780
    %v810 = vunpack.c.l.b16 %v781
    %v811 = vunpack.c.h.b16 %v781
    %v812 = vunpack.c.l.b16 %v782
    %v813 = vunpack.c.h.b16 %v782
    %v814 = vunpack.c.l.b16 %v783
    %v815 = vunpack.c.h.b16 %v783
    %v816 = vunpack.c.l.b16 %v784
    %v817 = vunpack.c.h.b16 %v784
    %v818 = vunpack.c.l.b16 %v785
    %v819 = vunpack.c.h.b16 %v785
    %v820 = vunpack.c.l.b16 %v786
    %v821 = vunpack.c.h.b16 %v786
    %v822 = vpack.c.b16 %v810, %v806
    %v823 = vpack.c.b16 %v811, %v807
    %v824 = vpack.c.b16 %v812, %v808
    %v825 = vpack.c.b16 %v813, %v809
    %v826 = vpack.c.b16 %v818, %v814
    %v827 = vpack.c.b16 %v819, %v815
    %v828 = vpack.c.b16 %v820, %v816
    %v829 = vpack.c.b16 %v821, %v817
    %v839 = vsel %vm217, %v787, 0
    %841 = vmatpush.bf16.msra.mxu0 0
    %842 = vmatpush.bf16.msra.mxu0 0
    %843 = vmatpush.bf16.msra.mxu0 0
    %844 = vmatpush.bf16.msra.mxu0 0
    %845 = vmatpush.bf16.msra.mxu0 0
    %846 = vmatpush.bf16.msra.mxu0 0
    %847 = vmatpush.bf16.msra.mxu0 %v826
    %848 = vmatpush.bf16.msra.mxu0 %v822
    %849 = vmatmul.bf16.gmra.mxu0 %v839
    %v850 = vpop.f32.mrf.mxu0
    %v851 = vadd.f32 %v790, %v850
    %v852 = vpop.f32.mrf.mxu0
    %853 = vdwg.mxu0
    %854 = vmatpush.bf16.msra.mxu0 0
    %855 = vmatpush.bf16.msra.mxu0 0
    %856 = vmatpush.bf16.msra.mxu0 0
    %857 = vmatpush.bf16.msra.mxu0 0
    %858 = vmatpush.bf16.msra.mxu0 0
    %859 = vmatpush.bf16.msra.mxu0 0
    %860 = vmatpush.bf16.msra.mxu0 %v827
    %861 = vmatpush.bf16.msra.mxu0 %v823
    %862 = vmatmul.bf16.gmra.mxu0 %v839
    %v863 = vpop.f32.mrf.mxu0
    %v864 = vadd.f32 %v791, %v863
    %v865 = vpop.f32.mrf.mxu0
    %866 = vdwg.mxu0
    %867 = vmatpush.bf16.msra.mxu0 0
    %868 = vmatpush.bf16.msra.mxu0 0
    %869 = vmatpush.bf16.msra.mxu0 0
    %870 = vmatpush.bf16.msra.mxu0 0
    %871 = vmatpush.bf16.msra.mxu0 0
    %872 = vmatpush.bf16.msra.mxu0 0
    %873 = vmatpush.bf16.msra.mxu0 %v828
    %874 = vmatpush.bf16.msra.mxu0 %v824
    %875 = vmatmul.bf16.gmra.mxu0 %v839
    %v876 = vpop.f32.mrf.mxu0
    %v877 = vadd.f32 %v792, %v876
    %v878 = vpop.f32.mrf.mxu0
    %879 = vdwg.mxu0
    %880 = vmatpush.bf16.msra.mxu0 0
    %881 = vmatpush.bf16.msra.mxu0 0
    %882 = vmatpush.bf16.msra.mxu0 0
    %883 = vmatpush.bf16.msra.mxu0 0
    %884 = vmatpush.bf16.msra.mxu0 0
    %885 = vmatpush.bf16.msra.mxu0 0
    %886 = vmatpush.bf16.msra.mxu0 %v829
    %887 = vmatpush.bf16.msra.mxu0 %v825
    %888 = vmatmul.bf16.gmra.mxu0 %v839
    %v889 = vpop.f32.mrf.mxu0
    %v890 = vadd.f32 %v793, %v889
    %v891 = vpop.f32.mrf.mxu0
    %892 = vdwg.mxu0
    %v893 = vmax.f32 %v851, 0.0
    %v894 = vmax.f32 %v864, 0.0
    %v895 = vmax.f32 %v877, 0.0
    %v896 = vmax.f32 %v890, 0.0
    %v897 = vld [vmem:[#allocation10] sm:$0xff]
    %v898 = vld [vmem:[#allocation10 + $0x8] sm:$0xff]
    %v899 = vld [vmem:[#allocation10 + $0x10] sm:$0xff]
    %v900 = vld [vmem:[#allocation10 + $0x18] sm:$0xff]
    %v901 = vld [vmem:[#allocation10 + $0x20] sm:$0xff]
    %v902 = vld [vmem:[#allocation10 + $0x28] sm:$0xff]
    %v903 = vld [vmem:[#allocation10 + $0x30] sm:$0xff]
    %v904 = vld [vmem:[#allocation10 + $0x38] sm:$0xff]
    %v905 = vld [vmem:[#allocation10 + $0x40] sm:$0xff]
    %v906 = vld [vmem:[#allocation10 + $0x48] sm:$0xff]
    %v907 = vld [vmem:[#allocation10 + $0x50] sm:$0xff]
    %v908 = vld [vmem:[#allocation10 + $0x58] sm:$0xff]
    %v909 = vld [vmem:[#allocation10 + $0x60] sm:$0xff]
    %v910 = vld [vmem:[#allocation10 + $0x68] sm:$0xff]
    %v911 = vld [vmem:[#allocation10 + $0x70] sm:$0xff]
    %v912 = vld [vmem:[#allocation10 + $0x78] sm:$0xff]
    %v913 = vld [vmem:[#allocation10 + $0x80] sm:$0xff]
    %v914 = vld [vmem:[#allocation10 + $0x88] sm:$0xff]
    %v915 = vld [vmem:[#allocation10 + $0x90] sm:$0xff]
    %v916 = vld [vmem:[#allocation10 + $0x98] sm:$0xff]
    %v917 = vld [vmem:[#allocation10 + $0xa0] sm:$0xff]
    %v918 = vld [vmem:[#allocation10 + $0xa8] sm:$0xff]
    %v919 = vld [vmem:[#allocation10 + $0xb0] sm:$0xff]
    %v920 = vld [vmem:[#allocation10 + $0xb8] sm:$0xff]
    %v921 = vld [vmem:[#allocation10 + $0xc0] sm:$0xff]
    %v922 = vld [vmem:[#allocation10 + $0xc8] sm:$0xff]
    %v923 = vld [vmem:[#allocation10 + $0xd0] sm:$0xff]
    %v924 = vld [vmem:[#allocation10 + $0xd8] sm:$0xff]
    %v925 = vld [vmem:[#allocation10 + $0xe0] sm:$0xff]
    %v926 = vld [vmem:[#allocation10 + $0xe8] sm:$0xff]
    %v927 = vld [vmem:[#allocation10 + $0xf0] sm:$0xff]
    %v928 = vld [vmem:[#allocation10 + $0xf8] sm:$0xff]
    %v929 = vld [vmem:[#allocation10 + $0x100] sm:$0xff]
    %v930 = vld [vmem:[#allocation10 + $0x108] sm:$0xff]
    %v931 = vld [vmem:[#allocation10 + $0x110] sm:$0xff]
    %v932 = vld [vmem:[#allocation10 + $0x118] sm:$0xff]
    %v933 = vld [vmem:[#allocation10 + $0x120] sm:$0xff]
    %v934 = vld [vmem:[#allocation10 + $0x128] sm:$0xff]
    %v935 = vld [vmem:[#allocation10 + $0x130] sm:$0xff]
    %v936 = vld [vmem:[#allocation10 + $0x138] sm:$0xff]
    %v937 = vld [vmem:[#allocation10 + $0x140] sm:$0xff]
    %v938 = vld [vmem:[#allocation10 + $0x148] sm:$0xff]
    %v939 = vld [vmem:[#allocation10 + $0x150] sm:$0xff]
    %v940 = vld [vmem:[#allocation10 + $0x158] sm:$0xff]
    %v941 = vld [vmem:[#allocation10 + $0x160] sm:$0xff]
    %v942 = vld [vmem:[#allocation10 + $0x168] sm:$0xff]
    %v943 = vld [vmem:[#allocation10 + $0x170] sm:$0xff]
    %v944 = vld [vmem:[#allocation10 + $0x178] sm:$0xff]
    %v945 = vld [vmem:[#allocation10 + $0x180] sm:$0xff]
    %v946 = vld [vmem:[#allocation10 + $0x188] sm:$0xff]
    %v947 = vld [vmem:[#allocation10 + $0x190] sm:$0xff]
    %v948 = vld [vmem:[#allocation10 + $0x198] sm:$0xff]
    %v949 = vld [vmem:[#allocation10 + $0x1a0] sm:$0xff]
    %v950 = vld [vmem:[#allocation10 + $0x1a8] sm:$0xff]
    %v951 = vld [vmem:[#allocation10 + $0x1b0] sm:$0xff]
    %v952 = vld [vmem:[#allocation10 + $0x1b8] sm:$0xff]
    %v953 = vld [vmem:[#allocation10 + $0x1c0] sm:$0xff]
    %v954 = vld [vmem:[#allocation10 + $0x1c8] sm:$0xff]
    %v955 = vld [vmem:[#allocation10 + $0x1d0] sm:$0xff]
    %v956 = vld [vmem:[#allocation10 + $0x1d8] sm:$0xff]
    %v957 = vld [vmem:[#allocation10 + $0x1e0] sm:$0xff]
    %v958 = vld [vmem:[#allocation10 + $0x1e8] sm:$0xff]
    %v959 = vld [vmem:[#allocation10 + $0x1f0] sm:$0xff]
    %v960 = vld [vmem:[#allocation10 + $0x1f8] sm:$0xff]
    %v961 = vpack.c.bf16 %v893, %v893
    %v962 = vpack.c.bf16 %v894, %v894
    %v963 = vpack.c.bf16 %v895, %v895
    %v964 = vpack.c.bf16 %v896, %v896
    %v965 = vld [vmem:[%s23] sm:$0x3]
    %v967 = vperm.slane %v965, 0
    %v968 = vperm.slane %v965, 1
    %v1035 = vunpack.c.l.b16 %v897
    %v1036 = vunpack.c.h.b16 %v897
    %v1037 = vunpack.c.l.b16 %v898
    %v1038 = vunpack.c.h.b16 %v898
    %v1039 = vunpack.c.l.b16 %v899
    %v1040 = vunpack.c.h.b16 %v899
    %v1041 = vunpack.c.l.b16 %v900
    %v1042 = vunpack.c.h.b16 %v900
    %v1043 = vunpack.c.l.b16 %v901
    %v1044 = vunpack.c.h.b16 %v901
    %v1045 = vunpack.c.l.b16 %v902
    %v1046 = vunpack.c.h.b16 %v902
    %v1047 = vunpack.c.l.b16 %v903
    %v1048 = vunpack.c.h.b16 %v903
    %v1049 = vunpack.c.l.b16 %v904
    %v1050 = vunpack.c.h.b16 %v904
    %v1051 = vunpack.c.l.b16 %v905
    %v1052 = vunpack.c.h.b16 %v905
    %v1053 = vunpack.c.l.b16 %v906
    %v1054 = vunpack.c.h.b16 %v906
    %v1055 = vunpack.c.l.b16 %v907
    %v1056 = vunpack.c.h.b16 %v907
    %v1057 = vunpack.c.l.b16 %v908
    %v1058 = vunpack.c.h.b16 %v908
    %v1059 = vunpack.c.l.b16 %v909
    %v1060 = vunpack.c.h.b16 %v909
    %v1061 = vunpack.c.l.b16 %v910
    %v1062 = vunpack.c.h.b16 %v910
    %v1063 = vunpack.c.l.b16 %v911
    %v1064 = vunpack.c.h.b16 %v911
    %v1065 = vunpack.c.l.b16 %v912
    %v1066 = vunpack.c.h.b16 %v912
    %v1067 = vunpack.c.l.b16 %v913
    %v1068 = vunpack.c.h.b16 %v913
    %v1069 = vunpack.c.l.b16 %v914
    %v1070 = vunpack.c.h.b16 %v914
    %v1071 = vunpack.c.l.b16 %v915
    %v1072 = vunpack.c.h.b16 %v915
    %v1073 = vunpack.c.l.b16 %v916
    %v1074 = vunpack.c.h.b16 %v916
    %v1075 = vunpack.c.l.b16 %v917
    %v1076 = vunpack.c.h.b16 %v917
    %v1077 = vunpack.c.l.b16 %v918
    %v1078 = vunpack.c.h.b16 %v918
    %v1079 = vunpack.c.l.b16 %v919
    %v1080 = vunpack.c.h.b16 %v919
    %v1081 = vunpack.c.l.b16 %v920
    %v1082 = vunpack.c.h.b16 %v920
    %v1083 = vunpack.c.l.b16 %v921
    %v1084 = vunpack.c.h.b16 %v921
    %v1085 = vunpack.c.l.b16 %v922
    %v1086 = vunpack.c.h.b16 %v922
    %v1087 = vunpack.c.l.b16 %v923
    %v1088 = vunpack.c.h.b16 %v923
    %v1089 = vunpack.c.l.b16 %v924
    %v1090 = vunpack.c.h.b16 %v924
    %v1091 = vunpack.c.l.b16 %v925
    %v1092 = vunpack.c.h.b16 %v925
    %v1093 = vunpack.c.l.b16 %v926
    %v1094 = vunpack.c.h.b16 %v926
    %v1095 = vunpack.c.l.b16 %v927
    %v1096 = vunpack.c.h.b16 %v927
    %v1097 = vunpack.c.l.b16 %v928
    %v1098 = vunpack.c.h.b16 %v928
    %v1099 = vunpack.c.l.b16 %v929
    %v1100 = vunpack.c.h.b16 %v929
    %v1101 = vunpack.c.l.b16 %v930
    %v1102 = vunpack.c.h.b16 %v930
    %v1103 = vunpack.c.l.b16 %v931
    %v1104 = vunpack.c.h.b16 %v931
    %v1105 = vunpack.c.l.b16 %v932
    %v1106 = vunpack.c.h.b16 %v932
    %v1107 = vunpack.c.l.b16 %v933
    %v1108 = vunpack.c.h.b16 %v933
    %v1109 = vunpack.c.l.b16 %v934
    %v1110 = vunpack.c.h.b16 %v934
    %v1111 = vunpack.c.l.b16 %v935
    %v1112 = vunpack.c.h.b16 %v935
    %v1113 = vunpack.c.l.b16 %v936
    %v1114 = vunpack.c.h.b16 %v936
    %v1115 = vunpack.c.l.b16 %v937
    %v1116 = vunpack.c.h.b16 %v937
    %v1117 = vunpack.c.l.b16 %v938
    %v1118 = vunpack.c.h.b16 %v938
    %v1119 = vunpack.c.l.b16 %v939
    %v1120 = vunpack.c.h.b16 %v939
    %v1121 = vunpack.c.l.b16 %v940
    %v1122 = vunpack.c.h.b16 %v940
    %v1123 = vunpack.c.l.b16 %v941
    %v1124 = vunpack.c.h.b16 %v941
    %v1125 = vunpack.c.l.b16 %v942
    %v1126 = vunpack.c.h.b16 %v942
    %v1127 = vunpack.c.l.b16 %v943
    %v1128 = vunpack.c.h.b16 %v943
    %v1129 = vunpack.c.l.b16 %v944
    %v1130 = vunpack.c.h.b16 %v944
    %v1131 = vunpack.c.l.b16 %v945
    %v1132 = vunpack.c.h.b16 %v945
    %v1133 = vunpack.c.l.b16 %v946
    %v1134 = vunpack.c.h.b16 %v946
    %v1135 = vunpack.c.l.b16 %v947
    %v1136 = vunpack.c.h.b16 %v947
    %v1137 = vunpack.c.l.b16 %v948
    %v1138 = vunpack.c.h.b16 %v948
    %v1139 = vunpack.c.l.b16 %v949
    %v1140 = vunpack.c.h.b16 %v949
    %v1141 = vunpack.c.l.b16 %v950
    %v1142 = vunpack.c.h.b16 %v950
    %v1143 = vunpack.c.l.b16 %v951
    %v1144 = vunpack.c.h.b16 %v951
    %v1145 = vunpack.c.l.b16 %v952
    %v1146 = vunpack.c.h.b16 %v952
    %v1147 = vunpack.c.l.b16 %v953
    %v1148 = vunpack.c.h.b16 %v953
    %v1149 = vunpack.c.l.b16 %v954
    %v1150 = vunpack.c.h.b16 %v954
    %v1151 = vunpack.c.l.b16 %v955
    %v1152 = vunpack.c.h.b16 %v955
    %v1153 = vunpack.c.l.b16 %v956
    %v1154 = vunpack.c.h.b16 %v956
    %v1155 = vunpack.c.l.b16 %v957
    %v1156 = vunpack.c.h.b16 %v957
    %v1157 = vunpack.c.l.b16 %v958
    %v1158 = vunpack.c.h.b16 %v958
    %v1159 = vunpack.c.l.b16 %v959
    %v1160 = vunpack.c.h.b16 %v959
    %v1161 = vunpack.c.l.b16 %v960
    %v1162 = vunpack.c.h.b16 %v960
    %v1163 = vpack.c.b16 %v1037, %v1035
    %v1164 = vpack.c.b16 %v1038, %v1036
    %v1165 = vpack.c.b16 %v1041, %v1039
    %v1166 = vpack.c.b16 %v1042, %v1040
    %v1167 = vpack.c.b16 %v1045, %v1043
    %v1168 = vpack.c.b16 %v1046, %v1044
    %v1169 = vpack.c.b16 %v1049, %v1047
    %v1170 = vpack.c.b16 %v1050, %v1048
    %v1171 = vpack.c.b16 %v1053, %v1051
    %v1172 = vpack.c.b16 %v1054, %v1052
    %v1173 = vpack.c.b16 %v1057, %v1055
    %v1174 = vpack.c.b16 %v1058, %v1056
    %v1175 = vpack.c.b16 %v1061, %v1059
    %v1176 = vpack.c.b16 %v1062, %v1060
    %v1177 = vpack.c.b16 %v1065, %v1063
    %v1178 = vpack.c.b16 %v1066, %v1064
    %v1179 = vpack.c.b16 %v1069, %v1067
    %v1180 = vpack.c.b16 %v1070, %v1068
    %v1181 = vpack.c.b16 %v1073, %v1071
    %v1182 = vpack.c.b16 %v1074, %v1072
    %v1183 = vpack.c.b16 %v1077, %v1075
    %v1184 = vpack.c.b16 %v1078, %v1076
    %v1185 = vpack.c.b16 %v1081, %v1079
    %v1186 = vpack.c.b16 %v1082, %v1080
    %v1187 = vpack.c.b16 %v1085, %v1083
    %v1188 = vpack.c.b16 %v1086, %v1084
    %v1189 = vpack.c.b16 %v1089, %v1087
    %v1190 = vpack.c.b16 %v1090, %v1088
    %v1191 = vpack.c.b16 %v1093, %v1091
    %v1192 = vpack.c.b16 %v1094, %v1092
    %v1193 = vpack.c.b16 %v1097, %v1095
    %v1194 = vpack.c.b16 %v1098, %v1096
    %v1195 = vpack.c.b16 %v1101, %v1099
    %v1196 = vpack.c.b16 %v1102, %v1100
    %v1197 = vpack.c.b16 %v1105, %v1103
    %v1198 = vpack.c.b16 %v1106, %v1104
    %v1199 = vpack.c.b16 %v1109, %v1107
    %v1200 = vpack.c.b16 %v1110, %v1108
    %v1201 = vpack.c.b16 %v1113, %v1111
    %v1202 = vpack.c.b16 %v1114, %v1112
    %v1203 = vpack.c.b16 %v1117, %v1115
    %v1204 = vpack.c.b16 %v1118, %v1116
    %v1205 = vpack.c.b16 %v1121, %v1119
    %v1206 = vpack.c.b16 %v1122, %v1120
    %v1207 = vpack.c.b16 %v1125, %v1123
    %v1208 = vpack.c.b16 %v1126, %v1124
    %v1209 = vpack.c.b16 %v1129, %v1127
    %v1210 = vpack.c.b16 %v1130, %v1128
    %v1211 = vpack.c.b16 %v1133, %v1131
    %v1212 = vpack.c.b16 %v1134, %v1132
    %v1213 = vpack.c.b16 %v1137, %v1135
    %v1214 = vpack.c.b16 %v1138, %v1136
    %v1215 = vpack.c.b16 %v1141, %v1139
    %v1216 = vpack.c.b16 %v1142, %v1140
    %v1217 = vpack.c.b16 %v1145, %v1143
    %v1218 = vpack.c.b16 %v1146, %v1144
    %v1219 = vpack.c.b16 %v1149, %v1147
    %v1220 = vpack.c.b16 %v1150, %v1148
    %v1221 = vpack.c.b16 %v1153, %v1151
    %v1222 = vpack.c.b16 %v1154, %v1152
    %v1223 = vpack.c.b16 %v1157, %v1155
    %v1224 = vpack.c.b16 %v1158, %v1156
    %v1225 = vpack.c.b16 %v1161, %v1159
    %v1226 = vpack.c.b16 %v1162, %v1160
    %1291 = vmatpush.bf16.msra.mxu0 %v1177
    %1292 = vmatpush.bf16.msra.mxu0 %v1175
    %1293 = vmatpush.bf16.msra.mxu0 %v1173
    %1294 = vmatpush.bf16.msra.mxu0 %v1171
    %1295 = vmatpush.bf16.msra.mxu0 %v1169
    %1296 = vmatpush.bf16.msra.mxu0 %v1167
    %1297 = vmatpush.bf16.msra.mxu0 %v1165
    %1298 = vmatpush.bf16.msra.mxu0 %v1163
    %1299 = vmatmul.bf16.gmra.mxu0 %v961
    %v1300 = vpop.f32.mrf.mxu0
    %v1301 = vadd.f32 %v967, %v1300
    %v1302 = vpop.f32.mrf.mxu0
    %1303 = vdwg.mxu0
    %1304 = vmatpush.bf16.msra.mxu0 %v1193
    %1305 = vmatpush.bf16.msra.mxu0 %v1191
    %1306 = vmatpush.bf16.msra.mxu0 %v1189
    %1307 = vmatpush.bf16.msra.mxu0 %v1187
    %1308 = vmatpush.bf16.msra.mxu0 %v1185
    %1309 = vmatpush.bf16.msra.mxu0 %v1183
    %1310 = vmatpush.bf16.msra.mxu0 %v1181
    %1311 = vmatpush.bf16.msra.mxu0 %v1179
    %1312 = vmatmul.bf16.gmra.mxu0 %v962
    %v1313 = vpop.f32.mrf.mxu0
    %v1314 = vadd.f32 %v1301, %v1313
    %v1315 = vpop.f32.mrf.mxu0
    %1316 = vdwg.mxu0
    %1317 = vmatpush.bf16.msra.mxu0 %v1209
    %1318 = vmatpush.bf16.msra.mxu0 %v1207
    %1319 = vmatpush.bf16.msra.mxu0 %v1205
    %1320 = vmatpush.bf16.msra.mxu0 %v1203
    %1321 = vmatpush.bf16.msra.mxu0 %v1201
    %1322 = vmatpush.bf16.msra.mxu0 %v1199
    %1323 = vmatpush.bf16.msra.mxu0 %v1197
    %1324 = vmatpush.bf16.msra.mxu0 %v1195
    %1325 = vmatmul.bf16.gmra.mxu0 %v963
    %v1326 = vpop.f32.mrf.mxu0
    %v1327 = vadd.f32 %v1314, %v1326
    %v1328 = vpop.f32.mrf.mxu0
    %1329 = vdwg.mxu0
    %1330 = vmatpush.bf16.msra.mxu0 %v1225
    %1331 = vmatpush.bf16.msra.mxu0 %v1223
    %1332 = vmatpush.bf16.msra.mxu0 %v1221
    %1333 = vmatpush.bf16.msra.mxu0 %v1219
    %1334 = vmatpush.bf16.msra.mxu0 %v1217
    %1335 = vmatpush.bf16.msra.mxu0 %v1215
    %1336 = vmatpush.bf16.msra.mxu0 %v1213
    %1337 = vmatpush.bf16.msra.mxu0 %v1211
    %1338 = vmatmul.bf16.gmra.mxu0 %v964
    %v1339 = vpop.f32.mrf.mxu0
    %v1340 = vadd.f32 %v1327, %v1339
    %v1341 = vpop.f32.mrf.mxu0
    %1342 = vdwg.mxu0
    %1343 = vmatpush.bf16.msra.mxu0 %v1178
    %1344 = vmatpush.bf16.msra.mxu0 %v1176
    %1345 = vmatpush.bf16.msra.mxu0 %v1174
    %1346 = vmatpush.bf16.msra.mxu0 %v1172
    %1347 = vmatpush.bf16.msra.mxu0 %v1170
    %1348 = vmatpush.bf16.msra.mxu0 %v1168
    %1349 = vmatpush.bf16.msra.mxu0 %v1166
    %1350 = vmatpush.bf16.msra.mxu0 %v1164
    %1351 = vmatmul.bf16.gmra.mxu0 %v961
    %v1352 = vpop.f32.mrf.mxu0
    %v1353 = vadd.f32 %v968, %v1352
    %v1354 = vpop.f32.mrf.mxu0
    %1355 = vdwg.mxu0
    %1356 = vmatpush.bf16.msra.mxu0 %v1194
    %1357 = vmatpush.bf16.msra.mxu0 %v1192
    %1358 = vmatpush.bf16.msra.mxu0 %v1190
    %1359 = vmatpush.bf16.msra.mxu0 %v1188
    %1360 = vmatpush.bf16.msra.mxu0 %v1186
    %1361 = vmatpush.bf16.msra.mxu0 %v1184
    %1362 = vmatpush.bf16.msra.mxu0 %v1182
    %1363 = vmatpush.bf16.msra.mxu0 %v1180
    %1364 = vmatmul.bf16.gmra.mxu0 %v962
    %v1365 = vpop.f32.mrf.mxu0
    %v1366 = vadd.f32 %v1353, %v1365
    %v1367 = vpop.f32.mrf.mxu0
    %1368 = vdwg.mxu0
    %1369 = vmatpush.bf16.msra.mxu0 %v1210
    %1370 = vmatpush.bf16.msra.mxu0 %v1208
    %1371 = vmatpush.bf16.msra.mxu0 %v1206
    %1372 = vmatpush.bf16.msra.mxu0 %v1204
    %1373 = vmatpush.bf16.msra.mxu0 %v1202
    %1374 = vmatpush.bf16.msra.mxu0 %v1200
    %1375 = vmatpush.bf16.msra.mxu0 %v1198
    %1376 = vmatpush.bf16.msra.mxu0 %v1196
    %1377 = vmatmul.bf16.gmra.mxu0 %v963
    %v1378 = vpop.f32.mrf.mxu0
    %v1379 = vadd.f32 %v1366, %v1378
    %v1380 = vpop.f32.mrf.mxu0
    %1381 = vdwg.mxu0
    %1382 = vmatpush.bf16.msra.mxu0 %v1226
    %1383 = vmatpush.bf16.msra.mxu0 %v1224
    %1384 = vmatpush.bf16.msra.mxu0 %v1222
    %1385 = vmatpush.bf16.msra.mxu0 %v1220
    %1386 = vmatpush.bf16.msra.mxu0 %v1218
    %1387 = vmatpush.bf16.msra.mxu0 %v1216
    %1388 = vmatpush.bf16.msra.mxu0 %v1214
    %1389 = vmatpush.bf16.msra.mxu0 %v1212
    %1390 = vmatmul.bf16.gmra.mxu0 %v964
    %v1391 = vpop.f32.mrf.mxu0
    %v1392 = vadd.f32 %v1379, %v1391
    %v1393 = vpop.f32.mrf.mxu0
    %1394 = vdwg.mxu0
    %v1395 = vmax.f32 %v1340, 0.0
    %v1396 = vmax.f32 %v1392, 0.0
    %v1397 = vld [vmem:[%s24] sm:$0xf]
    %v1398 = vld [vmem:[%s24 + $0x4] sm:$0xf]
    %v1399 = vld [vmem:[%s24 + $0x8] sm:$0xf]
    %v1400 = vld [vmem:[%s24 + $0xc] sm:$0xf]
    %v1401 = vld [vmem:[%s24 + $0x10] sm:$0xf]
    %v1402 = vld [vmem:[%s24 + $0x14] sm:$0xf]
    %v1403 = vld [vmem:[%s24 + $0x18] sm:$0xf]
    %v1404 = vld [vmem:[%s24 + $0x1c] sm:$0xf]
    %v1405 = vld [vmem:[%s24 + $0x20] sm:$0xf]
    %v1406 = vld [vmem:[%s24 + $0x24] sm:$0xf]
    %v1407 = vld [vmem:[%s24 + $0x28] sm:$0xf]
    %v1408 = vld [vmem:[%s24 + $0x2c] sm:$0xf]
    %v1409 = vld [vmem:[%s24 + $0x30] sm:$0xf]
    %v1410 = vld [vmem:[%s24 + $0x34] sm:$0xf]
    %v1411 = vld [vmem:[%s24 + $0x38] sm:$0xf]
    %v1412 = vld [vmem:[%s24 + $0x3c] sm:$0xf]
    %v1413 = vld [vmem:[%s24 + $0x40] sm:$0xf]
    %v1414 = vld [vmem:[%s24 + $0x44] sm:$0xf]
    %v1415 = vld [vmem:[%s24 + $0x48] sm:$0xf]
    %v1416 = vld [vmem:[%s24 + $0x4c] sm:$0xf]
    %v1417 = vld [vmem:[%s24 + $0x50] sm:$0xf]
    %v1418 = vld [vmem:[%s24 + $0x54] sm:$0xf]
    %v1419 = vld [vmem:[%s24 + $0x58] sm:$0xf]
    %v1420 = vld [vmem:[%s24 + $0x5c] sm:$0xf]
    %v1421 = vld [vmem:[%s24 + $0x60] sm:$0xf]
    %v1422 = vld [vmem:[%s24 + $0x64] sm:$0xf]
    %v1423 = vld [vmem:[%s24 + $0x68] sm:$0xf]
    %v1424 = vld [vmem:[%s24 + $0x6c] sm:$0xf]
    %v1425 = vld [vmem:[%s24 + $0x70] sm:$0xf]
    %v1426 = vld [vmem:[%s24 + $0x74] sm:$0xf]
    %v1427 = vld [vmem:[%s24 + $0x78] sm:$0xf]
    %v1428 = vld [vmem:[%s24 + $0x7c] sm:$0xf]
    %v1429 = vpack.c.bf16 %v1395, %v1395
    %v1430 = vpack.c.bf16 %v1396, %v1396
    %v1431 = vld [vmem:[%s25] sm:$0x1]
    %v1433 = vperm.slane %v1431, 0
    %v1467 = vunpack.c.l.b16 %v1397
    %v1468 = vunpack.c.l.b16 %v1398
    %v1469 = vunpack.c.l.b16 %v1399
    %v1470 = vunpack.c.l.b16 %v1400
    %v1471 = vunpack.c.l.b16 %v1401
    %v1472 = vunpack.c.l.b16 %v1402
    %v1473 = vunpack.c.l.b16 %v1403
    %v1474 = vunpack.c.l.b16 %v1404
    %v1475 = vunpack.c.l.b16 %v1405
    %v1476 = vunpack.c.l.b16 %v1406
    %v1477 = vunpack.c.l.b16 %v1407
    %v1478 = vunpack.c.l.b16 %v1408
    %v1479 = vunpack.c.l.b16 %v1409
    %v1480 = vunpack.c.l.b16 %v1410
    %v1481 = vunpack.c.l.b16 %v1411
    %v1482 = vunpack.c.l.b16 %v1412
    %v1483 = vunpack.c.l.b16 %v1413
    %v1484 = vunpack.c.l.b16 %v1414
    %v1485 = vunpack.c.l.b16 %v1415
    %v1486 = vunpack.c.l.b16 %v1416
    %v1487 = vunpack.c.l.b16 %v1417
    %v1488 = vunpack.c.l.b16 %v1418
    %v1489 = vunpack.c.l.b16 %v1419
    %v1490 = vunpack.c.l.b16 %v1420
    %v1491 = vunpack.c.l.b16 %v1421
    %v1492 = vunpack.c.l.b16 %v1422
    %v1493 = vunpack.c.l.b16 %v1423
    %v1494 = vunpack.c.l.b16 %v1424
    %v1495 = vunpack.c.l.b16 %v1425
    %v1496 = vunpack.c.l.b16 %v1426
    %v1497 = vunpack.c.l.b16 %v1427
    %v1498 = vunpack.c.l.b16 %v1428
    %v1499 = vpack.c.b16 %v1468, %v1467
    %v1500 = vpack.c.b16 %v1470, %v1469
    %v1501 = vpack.c.b16 %v1472, %v1471
    %v1502 = vpack.c.b16 %v1474, %v1473
    %v1503 = vpack.c.b16 %v1476, %v1475
    %v1504 = vpack.c.b16 %v1478, %v1477
    %v1505 = vpack.c.b16 %v1480, %v1479
    %v1506 = vpack.c.b16 %v1482, %v1481
    %v1507 = vpack.c.b16 %v1484, %v1483
    %v1508 = vpack.c.b16 %v1486, %v1485
    %v1509 = vpack.c.b16 %v1488, %v1487
    %v1510 = vpack.c.b16 %v1490, %v1489
    %v1511 = vpack.c.b16 %v1492, %v1491
    %v1512 = vpack.c.b16 %v1494, %v1493
    %v1513 = vpack.c.b16 %v1496, %v1495
    %v1514 = vpack.c.b16 %v1498, %v1497
    %1531 = vmatpush.bf16.msra.mxu0 %v1506
    %1532 = vmatpush.bf16.msra.mxu0 %v1505
    %1533 = vmatpush.bf16.msra.mxu0 %v1504
    %1534 = vmatpush.bf16.msra.mxu0 %v1503
    %1535 = vmatpush.bf16.msra.mxu0 %v1502
    %1536 = vmatpush.bf16.msra.mxu0 %v1501
    %1537 = vmatpush.bf16.msra.mxu0 %v1500
    %1538 = vmatpush.bf16.msra.mxu0 %v1499
    %1539 = vmatmul.bf16.gmra.mxu0 %v1429
    %v1540 = vpop.f32.mrf.mxu0
    %v1541 = vadd.f32 %v1433, %v1540
    %v1542 = vpop.f32.mrf.mxu0
    %1543 = vdwg.mxu0
    %1544 = vmatpush.bf16.msra.mxu0 %v1514
    %1545 = vmatpush.bf16.msra.mxu0 %v1513
    %1546 = vmatpush.bf16.msra.mxu0 %v1512
    %1547 = vmatpush.bf16.msra.mxu0 %v1511
    %1548 = vmatpush.bf16.msra.mxu0 %v1510
    %1549 = vmatpush.bf16.msra.mxu0 %v1509
    %1550 = vmatpush.bf16.msra.mxu0 %v1508
    %1551 = vmatpush.bf16.msra.mxu0 %v1507
    %1552 = vmatmul.bf16.gmra.mxu0 %v1430
    %v1553 = vpop.f32.mrf.mxu0
    %v1554 = vadd.f32 %v1541, %v1553
    %v1555 = vpop.f32.mrf.mxu0
    %1556 = vdwg.mxu0
    %vm1557 = vcmask 1041408
    %v1558 = vsel %vm1557, %v1554, -inf
    %1559 = vmax.xlane.f32.xlu0 %v1558
    %v1560 = vpop.xlane.xlu0 %1559
    %v1561 = vsub.f32 %v1554, %v1560
    %v1562 = vmul.f32 %v1561, 1.442695
    %v1563 = vpow.pop %v1562
    %v1564 = vsel %vm1557, %v1563, 0.0
    %1565 = vadd.xlane.f32.xlu0 %v1564
    %v1566 = vpop.xlane.xlu0 %1565
    %v1567 = vlog2.pop %v1566
    %v1568 = vmul.f32 %v1567, 0.6931472
    %v1569 = vsub.f32 %v1561, %v1568
    %1570 = vst [vmem:[#allocation11] sm:$0x3] %v1569
    // Predicated region
    $region126: #{intent_classifier_forward.1} parent=1 // pred_check
      _
    $region127: #{intent_classifier_forward.1} parent=1 // pred_check_branch
      %1572 = sbr.rel (0) target = $region129
    $region128: #{intent_classifier_forward.1} parent=1 // pred_region
      %1574 = vsyncadd [#allocation4], 0
      %s1576 = sshll.u32 [#allocation11], 4
      %s1577 = int_to_ptr.vmem [resolvable:$true] %s1576
      %s1578 = sshll.u32 %s26, 4
      %s1579 = int_to_ptr.hbm [resolvable:$true] %s1578
      %1581 = dma.vmem_to_hbm [thread:$0]  %s1577, 32, %s1579, [#allocation4]
    $region129: #{intent_classifier_forward.1} parent=1 // pred_fallthru
      _
    // Predicated region
    $region130: #{intent_classifier_forward.1} parent=1 // pred_check
      _
    $region131: #{intent_classifier_forward.1} parent=1 // pred_check_branch
      %1583 = sbr.rel (0) target = $region133
    $region132: #{intent_classifier_forward.1} parent=1 // pred_region
      %1585 = dma.done [#allocation4], 32
    $region133: #{intent_classifier_forward.1} parent=1 // pred_fallthru
      _
    %1586 = vsyncpa [#allocation3], 1
    %1587 = vsyncpa [#allocation6], 1
    %1588 = vsyncpa [#allocation9], 1
    %1589 = vsyncpa [#allocation4], 1

</llo_original>
